<compile_context>
chip_gen: v5e
topology: v5e:2x2
jax: 0.10.0
libtpu: 0.0.40
codegen_flags: <defaults>
</compile_context>

<pallas_src>
import jax
import jax.numpy as jnp
from jax.experimental import pallas as pl
from jax.experimental.pallas import tpu as pltpu


# ------------------------- fused Pallas kernel -------------------------

def _block_kernel(x_ref, dww_ref, pww_ref, o_ref):
    """Fused Block_: dw 3x3 (stride 1, pad 1, no bias) -> ReLU -> 1x1 conv (no bias).

    x_ref:   (1, H+2, W+2, C)  spatially pre-padded input tile (one image, f32)
    dww_ref: (9, C)            depthwise taps, (kh, kw) flattened row-major (f32)
    pww_ref: (C, Cout)         pointwise weight (bf16; MXU input dtype)
    o_ref:   (1, H, W, Cout)   output tile (f32)
    """
    H, W, Cout = o_ref.shape[1], o_ref.shape[2], o_ref.shape[3]
    C = x_ref.shape[3]

    x = x_ref[...]            # (1, H+2, W+2, C)
    dw = dww_ref[...]         # load the 9xC depthwise weights once

    # Depthwise 3x3: 9 shifted multiply-accumulates on the VPU, f32 accumulate.
    acc = jnp.zeros((1, H, W, C), jnp.float32)
    k = 0
    for di in range(3):
        for dj in range(3):
            acc = acc + x[:, di:di + H, dj:dj + W, :] * dw[k, :]
            k += 1
    acc = jnp.maximum(acc, 0.0)     # the single surviving ReLU of Block_

    # Pointwise 1x1 conv == (H*W, C) @ (C, Cout) on the MXU; bf16 in, f32 accumulate.
    lhs = acc.reshape(H * W, C).astype(pww_ref.dtype)
    y = jnp.dot(lhs, pww_ref[...], preferred_element_type=jnp.float32)
    # NOTE: no trailing ReLU (duplicate 'activation' key drops it in the reference).
    o_ref[...] = y.reshape(1, H, W, Cout)


def block_forward(params, x_nchw):
    """Block_ forward. x_nchw: (N, C, H, W) f32 -> (N, Cout, H, W) f32 (stride=1)."""
    # TODO(synk): stride > 1 variant of Block_ is not implemented (module default is 1).
    dw_w = params['dw_w']              # (9, C)      float32
    pw_w = params['pw_w']              # (C, Cout)   bfloat16
    N, C, H, W = x_nchw.shape
    Cout = pw_w.shape[1]

    x = jnp.transpose(x_nchw, (0, 2, 3, 1)).astype(jnp.float32)   # NCHW -> NHWC
    xp = jnp.pad(x, ((0, 0), (1, 1), (1, 1), (0, 0)))             # padding=1

    out = pl.pallas_call(
        _block_kernel,
        out_shape=jax.ShapeDtypeStruct((N, H, W, Cout), jnp.float32),
        grid=(N,),
        in_specs=[
            pl.BlockSpec((1, H + 2, W + 2, C), lambda n: (n, 0, 0, 0)),
            pl.BlockSpec((9, C), lambda n: (0, 0)),
            pl.BlockSpec((C, Cout), lambda n: (0, 0)),
        ],
        out_specs=pl.BlockSpec((1, H, W, Cout), lambda n: (n, 0, 0, 0)),
        compiler_params=pltpu.CompilerParams(dimension_semantics=("parallel",)),
    )(xp, dw_w, pw_w)
    return jnp.transpose(out, (0, 3, 1, 2))                       # NHWC -> NCHW


# ------------------------- params / reference -------------------------

def init_block_params(key, in_planes, out_planes):
    """Deterministic params matching PyTorch Conv2d default init (bound = 1/sqrt(fan_in))."""
    kd, kp = jax.random.split(key)
    # depthwise: torch weight (C, 1, 3, 3), groups=C, bias=False; fan_in = 9
    wd = jax.random.uniform(kd, (in_planes, 1, 3, 3), jnp.float32, -1.0 / 3.0, 1.0 / 3.0)
    dw_w = jnp.transpose(wd[:, 0, :, :], (1, 2, 0)).reshape(9, in_planes)     # (kh*kw, C)
    # pointwise: torch weight (Cout, C, 1, 1), bias=False; fan_in = C
    bp = 1.0 / (in_planes ** 0.5)
    wp = jax.random.uniform(kp, (out_planes, in_planes, 1, 1), jnp.float32, -bp, bp)
    pw_w = jnp.transpose(wp[:, :, 0, 0], (1, 0)).astype(jnp.bfloat16)         # (C, Cout)
    return {'dw_w': dw_w, 'pw_w': pw_w}


def block_reference(params, x_nchw):
    """Pure-JAX f32 reference of the same forward (for a tolerance check)."""
    x = jnp.transpose(x_nchw, (0, 2, 3, 1)).astype(jnp.float32)
    N, H, W, C = x.shape
    xp = jnp.pad(x, ((0, 0), (1, 1), (1, 1), (0, 0)))
    dw = params['dw_w']
    acc = jnp.zeros_like(x)
    k = 0
    for di in range(3):
        for dj in range(3):
            acc = acc + xp[:, di:di + H, dj:dj + W, :] * dw[k, :]
            k += 1
    acc = jnp.maximum(acc, 0.0)
    y = jnp.einsum('nhwc,cd->nhwd', acc, params['pw_w'].astype(jnp.float32))
    return jnp.transpose(y, (0, 3, 1, 2))


# ------------------------- demo -------------------------

if __name__ == "__main__":
    key = jax.random.PRNGKey(0)
    pkey, xkey = jax.random.split(key)

    # Block_(in_planes=64, out_planes=128), batch 2, 16x16 spatial.
    N, C, H, W, Cout = 2, 64, 16, 16, 128
    params = init_block_params(pkey, C, Cout)
    x = jax.random.normal(xkey, (N, C, H, W), jnp.float32)

    fwd = jax.jit(block_forward)
    out = jax.block_until_ready(fwd(params, x))

    assert out.shape == (N, Cout, H, W), out.shape
    assert bool(jnp.all(jnp.isfinite(out)))

    # bf16 MXU inputs vs f32 reference: allow ~1% relative error.
    ref = block_reference(params, x)
    assert bool(jnp.allclose(out, ref, rtol=5e-2, atol=5e-2)), float(
        jnp.max(jnp.abs(out - ref)))

    print("KERNEL_OK")
</pallas_src>

<mosaic_0001>
module attributes {stable_mosaic.version = 11 : i64} {
  func.func @_block_kernel(%arg0: i32, %arg1: memref<1x18x18x64xf32, #tpu.memory_space<vmem>>, %arg2: memref<9x64xf32, #tpu.memory_space<vmem>>, %arg3: memref<64x128xbf16, #tpu.memory_space<vmem>>, %arg4: memref<1x16x16x128xf32, #tpu.memory_space<vmem>>) attributes {dimension_semantics = [#tpu.dimension_semantics<parallel>], iteration_bounds = array<i64: 2>, scalar_prefetch = 0 : i64, scratch_operands = 0 : i64, tpu.core_type = #tpu.core_type<tc>, window_params = [{transform_indices = @transform_0, window_bounds = array<i64: 1, 18, 18, 64>}, {pipeline_mode = #tpu.pipeline_mode<synchronous>, transform_indices = @transform_1, window_bounds = array<i64: 9, 64>}, {pipeline_mode = #tpu.pipeline_mode<synchronous>, transform_indices = @transform_2, window_bounds = array<i64: 64, 128>}, {transform_indices = @transform_3, window_bounds = array<i64: 1, 16, 16, 128>}]} {
    %c0 = arith.constant 0 : index
    %c0_0 = arith.constant 0 : index
    %c0_1 = arith.constant 0 : index
    %c0_2 = arith.constant 0 : index
    %0 = vector.load %arg1[%c0, %c0_0, %c0_1, %c0_2] : memref<1x18x18x64xf32, #tpu.memory_space<vmem>>, vector<1x18x18x64xf32>
    %c0_3 = arith.constant 0 : index
    %c0_4 = arith.constant 0 : index
    %1 = vector.load %arg2[%c0_3, %c0_4] : memref<9x64xf32, #tpu.memory_space<vmem>>, vector<9x64xf32>
    %cst = arith.constant 0.000000e+00 : f32
    %2 = vector.broadcast %cst : f32 to vector<1x16x16x64xf32>
    %3 = vector.extract_strided_slice %0 {offsets = [0, 0, 0, 0], sizes = [1, 16, 16, 64], strides = [1, 1, 1, 1]} : vector<1x18x18x64xf32> to vector<1x16x16x64xf32>
    %4 = vector.extract_strided_slice %1 {offsets = [0, 0], sizes = [1, 64], strides = [1, 1]} : vector<9x64xf32> to vector<1x64xf32>
    %5 = vector.shape_cast %4 : vector<1x64xf32> to vector<64xf32>
    %6 = vector.shape_cast %5 : vector<64xf32> to vector<1x1x1x64xf32>
    %7 = vector.broadcast %6 : vector<1x1x1x64xf32> to vector<1x16x16x64xf32>
    %8 = arith.mulf %3, %7 : vector<1x16x16x64xf32>
    %9 = arith.addf %2, %8 : vector<1x16x16x64xf32>
    %10 = vector.extract_strided_slice %0 {offsets = [0, 0, 1, 0], sizes = [1, 16, 16, 64], strides = [1, 1, 1, 1]} : vector<1x18x18x64xf32> to vector<1x16x16x64xf32>
    %11 = vector.extract_strided_slice %1 {offsets = [1, 0], sizes = [1, 64], strides = [1, 1]} : vector<9x64xf32> to vector<1x64xf32>
    %12 = vector.shape_cast %11 : vector<1x64xf32> to vector<64xf32>
    %13 = vector.shape_cast %12 : vector<64xf32> to vector<1x1x1x64xf32>
    %14 = vector.broadcast %13 : vector<1x1x1x64xf32> to vector<1x16x16x64xf32>
    %15 = arith.mulf %10, %14 : vector<1x16x16x64xf32>
    %16 = arith.addf %9, %15 : vector<1x16x16x64xf32>
    %17 = vector.extract_strided_slice %0 {offsets = [0, 0, 2, 0], sizes = [1, 16, 16, 64], strides = [1, 1, 1, 1]} : vector<1x18x18x64xf32> to vector<1x16x16x64xf32>
    %18 = vector.extract_strided_slice %1 {offsets = [2, 0], sizes = [1, 64], strides = [1, 1]} : vector<9x64xf32> to vector<1x64xf32>
    %19 = vector.shape_cast %18 : vector<1x64xf32> to vector<64xf32>
    %20 = vector.shape_cast %19 : vector<64xf32> to vector<1x1x1x64xf32>
    %21 = vector.broadcast %20 : vector<1x1x1x64xf32> to vector<1x16x16x64xf32>
    %22 = arith.mulf %17, %21 : vector<1x16x16x64xf32>
    %23 = arith.addf %16, %22 : vector<1x16x16x64xf32>
    %24 = vector.extract_strided_slice %0 {offsets = [0, 1, 0, 0], sizes = [1, 16, 16, 64], strides = [1, 1, 1, 1]} : vector<1x18x18x64xf32> to vector<1x16x16x64xf32>
    %25 = vector.extract_strided_slice %1 {offsets = [3, 0], sizes = [1, 64], strides = [1, 1]} : vector<9x64xf32> to vector<1x64xf32>
    %26 = vector.shape_cast %25 : vector<1x64xf32> to vector<64xf32>
    %27 = vector.shape_cast %26 : vector<64xf32> to vector<1x1x1x64xf32>
    %28 = vector.broadcast %27 : vector<1x1x1x64xf32> to vector<1x16x16x64xf32>
    %29 = arith.mulf %24, %28 : vector<1x16x16x64xf32>
    %30 = arith.addf %23, %29 : vector<1x16x16x64xf32>
    %31 = vector.extract_strided_slice %0 {offsets = [0, 1, 1, 0], sizes = [1, 16, 16, 64], strides = [1, 1, 1, 1]} : vector<1x18x18x64xf32> to vector<1x16x16x64xf32>
    %32 = vector.extract_strided_slice %1 {offsets = [4, 0], sizes = [1, 64], strides = [1, 1]} : vector<9x64xf32> to vector<1x64xf32>
    %33 = vector.shape_cast %32 : vector<1x64xf32> to vector<64xf32>
    %34 = vector.shape_cast %33 : vector<64xf32> to vector<1x1x1x64xf32>
    %35 = vector.broadcast %34 : vector<1x1x1x64xf32> to vector<1x16x16x64xf32>
    %36 = arith.mulf %31, %35 : vector<1x16x16x64xf32>
    %37 = arith.addf %30, %36 : vector<1x16x16x64xf32>
    %38 = vector.extract_strided_slice %0 {offsets = [0, 1, 2, 0], sizes = [1, 16, 16, 64], strides = [1, 1, 1, 1]} : vector<1x18x18x64xf32> to vector<1x16x16x64xf32>
    %39 = vector.extract_strided_slice %1 {offsets = [5, 0], sizes = [1, 64], strides = [1, 1]} : vector<9x64xf32> to vector<1x64xf32>
    %40 = vector.shape_cast %39 : vector<1x64xf32> to vector<64xf32>
    %41 = vector.shape_cast %40 : vector<64xf32> to vector<1x1x1x64xf32>
    %42 = vector.broadcast %41 : vector<1x1x1x64xf32> to vector<1x16x16x64xf32>
    %43 = arith.mulf %38, %42 : vector<1x16x16x64xf32>
    %44 = arith.addf %37, %43 : vector<1x16x16x64xf32>
    %45 = vector.extract_strided_slice %0 {offsets = [0, 2, 0, 0], sizes = [1, 16, 16, 64], strides = [1, 1, 1, 1]} : vector<1x18x18x64xf32> to vector<1x16x16x64xf32>
    %46 = vector.extract_strided_slice %1 {offsets = [6, 0], sizes = [1, 64], strides = [1, 1]} : vector<9x64xf32> to vector<1x64xf32>
    %47 = vector.shape_cast %46 : vector<1x64xf32> to vector<64xf32>
    %48 = vector.shape_cast %47 : vector<64xf32> to vector<1x1x1x64xf32>
    %49 = vector.broadcast %48 : vector<1x1x1x64xf32> to vector<1x16x16x64xf32>
    %50 = arith.mulf %45, %49 : vector<1x16x16x64xf32>
    %51 = arith.addf %44, %50 : vector<1x16x16x64xf32>
    %52 = vector.extract_strided_slice %0 {offsets = [0, 2, 1, 0], sizes = [1, 16, 16, 64], strides = [1, 1, 1, 1]} : vector<1x18x18x64xf32> to vector<1x16x16x64xf32>
    %53 = vector.extract_strided_slice %1 {offsets = [7, 0], sizes = [1, 64], strides = [1, 1]} : vector<9x64xf32> to vector<1x64xf32>
    %54 = vector.shape_cast %53 : vector<1x64xf32> to vector<64xf32>
    %55 = vector.shape_cast %54 : vector<64xf32> to vector<1x1x1x64xf32>
    %56 = vector.broadcast %55 : vector<1x1x1x64xf32> to vector<1x16x16x64xf32>
    %57 = arith.mulf %52, %56 : vector<1x16x16x64xf32>
    %58 = arith.addf %51, %57 : vector<1x16x16x64xf32>
    %59 = vector.extract_strided_slice %0 {offsets = [0, 2, 2, 0], sizes = [1, 16, 16, 64], strides = [1, 1, 1, 1]} : vector<1x18x18x64xf32> to vector<1x16x16x64xf32>
    %60 = vector.extract_strided_slice %1 {offsets = [8, 0], sizes = [1, 64], strides = [1, 1]} : vector<9x64xf32> to vector<1x64xf32>
    %61 = vector.shape_cast %60 : vector<1x64xf32> to vector<64xf32>
    %62 = vector.shape_cast %61 : vector<64xf32> to vector<1x1x1x64xf32>
    %63 = vector.broadcast %62 : vector<1x1x1x64xf32> to vector<1x16x16x64xf32>
    %64 = arith.mulf %59, %63 : vector<1x16x16x64xf32>
    %65 = arith.addf %58, %64 : vector<1x16x16x64xf32>
    %cst_5 = arith.constant 0.000000e+00 : f32
    %66 = vector.broadcast %cst_5 : f32 to vector<1x16x16x64xf32>
    %67 = arith.maximumf %65, %66 : vector<1x16x16x64xf32>
    %68 = vector.shape_cast %67 : vector<1x16x16x64xf32> to vector<256x64xf32>
    %69 = arith.truncf %68 : vector<256x64xf32> to vector<256x64xbf16>
    %c0_6 = arith.constant 0 : index
    %c0_7 = arith.constant 0 : index
    %70 = vector.load %arg3[%c0_6, %c0_7] : memref<64x128xbf16, #tpu.memory_space<vmem>>, vector<64x128xbf16>
    %cst_8 = arith.constant dense<0.000000e+00> : vector<256x128xf32>
    %71 = tpu.matmul %69, %70, %cst_8 {dimension_numbers = #tpu.dot_dimension_numbers<[1], [0], [0], [1], [0, 0, 1, 1], [], []>} : vector<256x64xbf16>, vector<64x128xbf16>, vector<256x128xf32> -> vector<256x128xf32>
    %72 = vector.shape_cast %71 : vector<256x128xf32> to vector<1x16x16x128xf32>
    %c0_9 = arith.constant 0 : index
    %c0_10 = arith.constant 0 : index
    %c0_11 = arith.constant 0 : index
    %c0_12 = arith.constant 0 : index
    %73 = vector.load %arg4[%c0_9, %c0_10, %c0_11, %c0_12] : memref<1x16x16x128xf32, #tpu.memory_space<vmem>>, vector<1x16x16x128xf32>
    tpu.vector_store %arg4[%c0_9, %c0_10, %c0_11, %c0_12], %72 {strides = array<i32>} : memref<1x16x16x128xf32, #tpu.memory_space<vmem>>, vector<1x16x16x128xf32>,
    return
  }
  func.func @transform_0(%arg0: i32) -> (i32, i32, i32, i32) {
    %c0_i32 = arith.constant 0 : i32
    %c0_i32_0 = arith.constant 0 : i32
    %c0_i32_1 = arith.constant 0 : i32
    %c0_i32_2 = arith.constant 0 : i32
    return %arg0, %c0_i32, %c0_i32_0, %c0_i32_1 : i32, i32, i32, i32
  }
  func.func @transform_1(%arg0: i32) -> (i32, i32) {
    %c0_i32 = arith.constant 0 : i32
    %c0_i32_0 = arith.constant 0 : i32
    %c0_i32_1 = arith.constant 0 : i32
    return %c0_i32, %c0_i32_0 : i32, i32
  }
  func.func @transform_2(%arg0: i32) -> (i32, i32) {
    %c0_i32 = arith.constant 0 : i32
    %c0_i32_0 = arith.constant 0 : i32
    %c0_i32_1 = arith.constant 0 : i32
    return %c0_i32, %c0_i32_0 : i32, i32
  }
  func.func @transform_3(%arg0: i32) -> (i32, i32, i32, i32) {
    %c0_i32 = arith.constant 0 : i32
    %c0_i32_0 = arith.constant 0 : i32
    %c0_i32_1 = arith.constant 0 : i32
    %c0_i32_2 = arith.constant 0 : i32
    return %arg0, %c0_i32, %c0_i32_0, %c0_i32_1 : i32, i32, i32, i32
  }
}

</mosaic_0001>

<llo_original>
// kernel: block_forward.1
$region0: #{block_forward.1}
  #allocation0 [shape = 'u32[]', space=smem, size = 0x4, offset = 0x4, fixed_abs, tag = 'smem constant byte address 0x4 - core index']
  #allocation1 [shape = 'u32[72,128]{1,0:T(1,128)}', space=vmem, size = 0x9000, scoped, tag = 'internal scratch']
  %s0 = inlined_call_operand.vmem [shape: f32[2,18,18,64], index: 0, kind: input, shape index: {}]
  %s1 = inlined_call_operand.vmem [shape: f32[9,64], index: 1, kind: input, shape index: {}]
  %s2 = inlined_call_operand.vmem [shape: bf16[64,128], index: 2, kind: input, shape index: {}]
  %s3 = inlined_call_operand.hbm [shape: f32[2,16,16,128], index: 3, kind: output, shape index: {}]
  %s4 = sld [smem:[#allocation0]]
  $region45: #{block_forward.1} parent=0
    _
  %s6 = ssub.s32 1, %s4
  %s7 = scalar_select 0, %s6, %s4
  $region1: #{block_forward.1} parent=0
    #allocation2 [shape = 'u8[262144]{0}', space=vmem, size = 0x40000, scoped, tag = 'output window, operand 0']
    #allocation3 [shape = 's32[2]{0}', space=sflag, size = 0x8, scoped, tag = 'scoped memory for block_forward.1']
    %8 = vsyncpa [#allocation3], 0
    %s9 = scalar_lea.sflag [#allocation3], 1
    %10 = vsyncpa %s9, 0
    loop: start=0, step=1, limit=4
    $region2: #{block_forward.1} parent=1 // loop_pre_header
      _
    $region3: #{block_forward.1} parent=1 // loop_header
      %s12 = sphi 0, %s16
      %p13 = scmp.ge.s32.totalorder %s12, 4
      %s22 = sphi 0, %s24
      %s25 = sphi 0, %s22
      %s26 = sphi 0, %s25
      %s42 = sphi 0, %s26
      %s46 = sphi 0, %s46
      %s48 = sphi 0, %s46
      %s49 = sphi 0, %s48
      %s63 = sphi 0, %s49
      %s67 = sphi 0, %s67
      %s69 = sphi 0, %s67
      %s70 = sphi 0, %s69
      %s84 = sphi 0, %s70
      %s90 = sphi 0, %s92
      %s93 = sphi 0, %s90
      %s94 = sphi 0, %s93
      %s110 = sphi 0, %s94
    $region4: #{block_forward.1} parent=1 // loop_header_branch
      %15 = sbr.rel (%p13) target = $region8
    $region5: #{block_forward.1} parent=1 // loop_body
      %s17 = ssub.s32 %s12, 1
      %s18 = ssub.s32 %s12, 2
      %s19 = sadd.s32 %s12, 1
      %s20 = ssub.s32 %s12, %s19
      %p21 = scmp.eq.s32.totalorder %s20, 0
      %s23 = sadd.s32 %s22, 1
      %s24 = scalar_select %p21, %s22, %s23
      %p27 = pneg %p21
      %p28 = scmp.eq.s32.totalorder %s12, 1
      %p29 = por %p27, %p28
      %p30 = scmp.ne.s32.totalorder %s22, %s25
      %p31 = scmp.eq.s32.totalorder %s12, 0
      %p32 = por %p30, %p31
      %p33 = scmp.ne.s32.totalorder %s22, %s25
      %p34 = scmp.eq.s32.totalorder %s17, 1
      %p35 = por %p33, %p34
      %p36 = scmp.ne.s32.totalorder %s25, %s26
      %p37 = scmp.eq.s32.totalorder %s17, 0
      %p38 = por %p36, %p37
      %p39 = scmp.ne.s32.totalorder %s25, %s26
      %p40 = scmp.eq.s32.totalorder %s18, 1
      %p41 = por %p39, %p40
      %p43 = scmp.ne.s32.totalorder %s26, %s42
      %p44 = scmp.eq.s32.totalorder %s18, 0
      %p45 = por %p43, %p44
      %s47 = sadd.s32 %s46, 1
      %p50 = scmp.eq.s32.totalorder %s12, 1
      %p51 = scmp.ne.s32.totalorder %s46, %s48
      %p52 = scmp.eq.s32.totalorder %s12, 0
      %p53 = por %p51, %p52
      %p54 = scmp.ne.s32.totalorder %s46, %s48
      %p55 = scmp.eq.s32.totalorder %s17, 1
      %p56 = por %p54, %p55
      %p57 = scmp.ne.s32.totalorder %s48, %s49
      %p58 = scmp.eq.s32.totalorder %s17, 0
      %p59 = por %p57, %p58
      %p60 = scmp.ne.s32.totalorder %s48, %s49
      %p61 = scmp.eq.s32.totalorder %s18, 1
      %p62 = por %p60, %p61
      %p64 = scmp.ne.s32.totalorder %s49, %s63
      %p65 = scmp.eq.s32.totalorder %s18, 0
      %p66 = por %p64, %p65
      %s68 = sadd.s32 %s67, 1
      %p71 = scmp.eq.s32.totalorder %s12, 1
      %p72 = scmp.ne.s32.totalorder %s67, %s69
      %p73 = scmp.eq.s32.totalorder %s12, 0
      %p74 = por %p72, %p73
      %p75 = scmp.ne.s32.totalorder %s67, %s69
      %p76 = scmp.eq.s32.totalorder %s17, 1
      %p77 = por %p75, %p76
      %p78 = scmp.ne.s32.totalorder %s69, %s70
      %p79 = scmp.eq.s32.totalorder %s17, 0
      %p80 = por %p78, %p79
      %p81 = scmp.ne.s32.totalorder %s69, %s70
      %p82 = scmp.eq.s32.totalorder %s18, 1
      %p83 = por %p81, %p82
      %p85 = scmp.ne.s32.totalorder %s70, %s84
      %p86 = scmp.eq.s32.totalorder %s18, 0
      %p87 = por %p85, %p86
      %s88 = ssub.s32 %s12, %s19
      %p89 = scmp.eq.s32.totalorder %s88, 0
      %s91 = sadd.s32 %s90, 1
      %s92 = scalar_select %p89, %s90, %s91
      %p95 = pneg %p89
      %p96 = scmp.eq.s32.totalorder %s12, 1
      %p97 = por %p95, %p96
      %p98 = scmp.ne.s32.totalorder %s90, %s93
      %p99 = scmp.eq.s32.totalorder %s12, 0
      %p100 = por %p98, %p99
      %p101 = scmp.ne.s32.totalorder %s90, %s93
      %p102 = scmp.eq.s32.totalorder %s17, 1
      %p103 = por %p101, %p102
      %p104 = scmp.ne.s32.totalorder %s93, %s94
      %p105 = scmp.eq.s32.totalorder %s17, 0
      %p106 = por %p104, %p105
      %p107 = scmp.ne.s32.totalorder %s93, %s94
      %p108 = scmp.eq.s32.totalorder %s18, 1
      %p109 = por %p107, %p108
      %p111 = scmp.ne.s32.totalorder %s94, %s110
      %p112 = scmp.eq.s32.totalorder %s18, 0
      %p113 = por %p111, %p112
      %p114 = scmp.le.s32.totalorder 1, %s12
      %p115 = scmp.lt.s32.totalorder %s12, 3
      %p116 = pnand %p114, %p115
      %p117 = pneg %p116
      // Predicated region
      $region9: #{block_forward.1} parent=5 // pred_check
        _
      $region10: #{block_forward.1} parent=5 // pred_check_branch
        %119 = sbr.rel (%p116) target = $region12
      $region11: #{block_forward.1} parent=5 // pred_region
        %s120 = ssub.s32 %s12, 1
        // Predicated region
        $region13: #{block_forward.1} parent=11 // pred_check
          %p121 = pneg %p59
        $region14: #{block_forward.1} parent=11 // pred_check_branch
          %123 = sbr.rel (%p121) target = $region16
        $region15: #{block_forward.1} parent=11 // pred_region
          _
        $region16: #{block_forward.1} parent=11 // pred_fallthru
          _
        // Predicated region
        $region17: #{block_forward.1} parent=11 // pred_check
          %p124 = pneg %p80
        $region18: #{block_forward.1} parent=11 // pred_check_branch
          %126 = sbr.rel (%p124) target = $region20
        $region19: #{block_forward.1} parent=11 // pred_region
          _
        $region20: #{block_forward.1} parent=11 // pred_fallthru
          _
      $region12: #{block_forward.1} parent=5 // pred_fallthru
        _
      %p127 = scmp.lt.s32.totalorder %s12, 2
      // Predicated region
      $region21: #{block_forward.1} parent=5 // pred_check
        %p128 = pneg %p127
      $region22: #{block_forward.1} parent=5 // pred_check_branch
        %130 = sbr.rel (%p128) target = $region24
      $region23: #{block_forward.1} parent=5 // pred_region
        // Predicated region
        $region25: #{block_forward.1} parent=23 // pred_check
          %p131 = pneg %p32
        $region26: #{block_forward.1} parent=23 // pred_check_branch
          %133 = sbr.rel (%p131) target = $region28
        $region27: #{block_forward.1} parent=23 // pred_region
          %p134 = scmp.lt.s32.totalorder %s12, 1
          %s135 = scalar_select %p134, %s12, 1
          %s136 = smul.addr %s135, 54
          %s137 = smul.addr %s136, 8
          %s138 = scalar_lea.vmem %s0, %s137
        $region28: #{block_forward.1} parent=23 // pred_fallthru
          _
      $region24: #{block_forward.1} parent=5 // pred_fallthru
        _
      %p139 = scmp.le.s32.totalorder 1, %s12
      %p140 = scmp.lt.s32.totalorder %s12, 3
      %p141 = pnand %p139, %p140
      %p142 = pneg %p141
      // Predicated region
      $region29: #{block_forward.1} parent=5 // pred_check
        _
      $region30: #{block_forward.1} parent=5 // pred_check_branch
        %144 = sbr.rel (%p141) target = $region32
      $region31: #{block_forward.1} parent=5 // pred_region
        %s145 = ssub.s32 %s12, 1
        %p146 = scmp.lt.s32.totalorder %s17, 1
        %s147 = scalar_select %p146, %s17, 1
        %s148 = smul.addr %s147, 54
        %s149 = smul.addr %s148, 8
        %s150 = scalar_lea.vmem %s0, %s149
        %p151 = pneg %p38
        %p152 = pneg %p35
        %p153 = pneg %p59
        %p154 = pneg %p56
        %p155 = pneg %p80
        %p156 = pneg %p77
        %p157 = pneg %p106
        %p158 = pneg %p103
        %s159 = sand.u32 %s93, 1
        %s160 = scalar_lea.sflag [#allocation3], %s159
        %s161 = sand.u32 %s93, 1
        %s162 = smul.addr %s161, 256
        %s163 = scalar_lea.vmem [#allocation2], %s162
        %p164 = scmp.lt.s32.totalorder %s17, 1
        %s165 = scalar_select %p164, %s17, 1
        %s166 = smul.addr %s165, 54
        %s167 = smul.addr %s166, 8
        %s168 = scalar_lea.vmem %s0, %s167
        %v170 = vld [vmem:[%s168] sm:$0xff]
        %v171 = vld [vmem:[%s168 + $0x8] sm:$0xff]
        %v172 = vld [vmem:[%s168 + $0x10] sm:$0x3]
        %v173 = vld [vmem:[%s168 + $0x18] sm:$0xff]
        %v174 = vld [vmem:[%s168 + $0x20] sm:$0xff]
        %v175 = vld [vmem:[%s168 + $0x28] sm:$0x3]
        %v176 = vld [vmem:[%s168 + $0x30] sm:$0xff]
        %v177 = vld [vmem:[%s168 + $0x38] sm:$0xff]
        %v178 = vld [vmem:[%s168 + $0x40] sm:$0x3]
        %v179 = vld [vmem:[%s168 + $0x48] sm:$0xff]
        %v180 = vld [vmem:[%s168 + $0x50] sm:$0xff]
        %v181 = vld [vmem:[%s168 + $0x58] sm:$0x3]
        %v182 = vld [vmem:[%s168 + $0x60] sm:$0xff]
        %v183 = vld [vmem:[%s168 + $0x68] sm:$0xff]
        %v184 = vld [vmem:[%s168 + $0x70] sm:$0x3]
        %v185 = vld [vmem:[%s168 + $0x78] sm:$0xff]
        %v186 = vld [vmem:[%s168 + $0x80] sm:$0xff]
        %v187 = vld [vmem:[%s168 + $0x88] sm:$0x3]
        %v188 = vld [vmem:[%s168 + $0x90] sm:$0xff]
        %v189 = vld [vmem:[%s168 + $0x98] sm:$0xff]
        %v190 = vld [vmem:[%s168 + $0xa0] sm:$0x3]
        %v191 = vld [vmem:[%s168 + $0xa8] sm:$0xff]
        %v192 = vld [vmem:[%s168 + $0xb0] sm:$0xff]
        %v193 = vld [vmem:[%s168 + $0xb8] sm:$0x3]
        %v194 = vld [vmem:[%s168 + $0xc0] sm:$0xff]
        %v195 = vld [vmem:[%s168 + $0xc8] sm:$0xff]
        %v196 = vld [vmem:[%s168 + $0xd0] sm:$0x3]
        %v197 = vld [vmem:[%s168 + $0xd8] sm:$0xff]
        %v198 = vld [vmem:[%s168 + $0xe0] sm:$0xff]
        %v199 = vld [vmem:[%s168 + $0xe8] sm:$0x3]
        %v200 = vld [vmem:[%s168 + $0xf0] sm:$0xff]
        %v201 = vld [vmem:[%s168 + $0xf8] sm:$0xff]
        %v202 = vld [vmem:[%s168 + $0x100] sm:$0x3]
        %v203 = vld [vmem:[%s168 + $0x108] sm:$0xff]
        %v204 = vld [vmem:[%s168 + $0x110] sm:$0xff]
        %v205 = vld [vmem:[%s168 + $0x118] sm:$0x3]
        %v206 = vld [vmem:[%s168 + $0x120] sm:$0xff]
        %v207 = vld [vmem:[%s168 + $0x128] sm:$0xff]
        %v208 = vld [vmem:[%s168 + $0x130] sm:$0x3]
        %v209 = vld [vmem:[%s168 + $0x138] sm:$0xff]
        %v210 = vld [vmem:[%s168 + $0x140] sm:$0xff]
        %v211 = vld [vmem:[%s168 + $0x148] sm:$0x3]
        %v212 = vld [vmem:[%s168 + $0x150] sm:$0xff]
        %v213 = vld [vmem:[%s168 + $0x158] sm:$0xff]
        %v214 = vld [vmem:[%s168 + $0x160] sm:$0x3]
        %v215 = vld [vmem:[%s168 + $0x168] sm:$0xff]
        %v216 = vld [vmem:[%s168 + $0x170] sm:$0xff]
        %v217 = vld [vmem:[%s168 + $0x178] sm:$0x3]
        %v218 = vld [vmem:[%s168 + $0x180] sm:$0xff]
        %v219 = vld [vmem:[%s168 + $0x188] sm:$0xff]
        %v220 = vld [vmem:[%s168 + $0x190] sm:$0x3]
        %v221 = vld [vmem:[%s168 + $0x198] sm:$0xff]
        %v222 = vld [vmem:[%s168 + $0x1a0] sm:$0xff]
        %v223 = vld [vmem:[%s168 + $0x1a8] sm:$0x3]
        %v224 = vld [vmem:[%s1] sm:$0xff]
        %v225 = vld [vmem:[%s1 + $0x8] sm:$0x1]
        %v226 = vperm.slane %v224, 0
        %v227 = vmul.f32 %v170, %v226
        %v228 = vmul.f32 %v171, %v226
        %v229 = vmul.f32 %v173, %v226
        %v230 = vmul.f32 %v174, %v226
        %v231 = vmul.f32 %v176, %v226
        %v232 = vmul.f32 %v177, %v226
        %v233 = vmul.f32 %v179, %v226
        %v234 = vmul.f32 %v180, %v226
        %v235 = vmul.f32 %v182, %v226
        %v236 = vmul.f32 %v183, %v226
        %v237 = vmul.f32 %v185, %v226
        %v238 = vmul.f32 %v186, %v226
        %v239 = vmul.f32 %v188, %v226
        %v240 = vmul.f32 %v189, %v226
        %v241 = vmul.f32 %v191, %v226
        %v242 = vmul.f32 %v192, %v226
        %v243 = vmul.f32 %v194, %v226
        %v244 = vmul.f32 %v195, %v226
        %v245 = vmul.f32 %v197, %v226
        %v246 = vmul.f32 %v198, %v226
        %v247 = vmul.f32 %v200, %v226
        %v248 = vmul.f32 %v201, %v226
        %v249 = vmul.f32 %v203, %v226
        %v250 = vmul.f32 %v204, %v226
        %v251 = vmul.f32 %v206, %v226
        %v252 = vmul.f32 %v207, %v226
        %v253 = vmul.f32 %v209, %v226
        %v254 = vmul.f32 %v210, %v226
        %v255 = vmul.f32 %v212, %v226
        %v256 = vmul.f32 %v213, %v226
        %v257 = vmul.f32 %v215, %v226
        %v258 = vmul.f32 %v216, %v226
        %v259 = vadd.f32 %v227, 0.0
        %v260 = vadd.f32 %v228, 0.0
        %v261 = vadd.f32 %v229, 0.0
        %v262 = vadd.f32 %v230, 0.0
        %v263 = vadd.f32 %v231, 0.0
        %v264 = vadd.f32 %v232, 0.0
        %v265 = vadd.f32 %v233, 0.0
        %v266 = vadd.f32 %v234, 0.0
        %v267 = vadd.f32 %v235, 0.0
        %v268 = vadd.f32 %v236, 0.0
        %v269 = vadd.f32 %v237, 0.0
        %v270 = vadd.f32 %v238, 0.0
        %v271 = vadd.f32 %v239, 0.0
        %v272 = vadd.f32 %v240, 0.0
        %v273 = vadd.f32 %v241, 0.0
        %v274 = vadd.f32 %v242, 0.0
        %v275 = vadd.f32 %v243, 0.0
        %v276 = vadd.f32 %v244, 0.0
        %v277 = vadd.f32 %v245, 0.0
        %v278 = vadd.f32 %v246, 0.0
        %v279 = vadd.f32 %v247, 0.0
        %v280 = vadd.f32 %v248, 0.0
        %v281 = vadd.f32 %v249, 0.0
        %v282 = vadd.f32 %v250, 0.0
        %v283 = vadd.f32 %v251, 0.0
        %v284 = vadd.f32 %v252, 0.0
        %v285 = vadd.f32 %v253, 0.0
        %v286 = vadd.f32 %v254, 0.0
        %v287 = vadd.f32 %v255, 0.0
        %v288 = vadd.f32 %v256, 0.0
        %v289 = vadd.f32 %v257, 0.0
        %v290 = vadd.f32 %v258, 0.0
        %v291 = vperm.slane %v224, 1
        %v292 = vmul.f32 %v170, %v291
        %v293 = vmul.f32 %v171, %v291
        %v294 = vmul.f32 %v172, %v291
        %v295 = vmul.f32 %v173, %v291
        %v296 = vmul.f32 %v174, %v291
        %v297 = vmul.f32 %v175, %v291
        %v298 = vmul.f32 %v176, %v291
        %v299 = vmul.f32 %v177, %v291
        %v300 = vmul.f32 %v178, %v291
        %v301 = vmul.f32 %v179, %v291
        %v302 = vmul.f32 %v180, %v291
        %v303 = vmul.f32 %v181, %v291
        %v304 = vmul.f32 %v182, %v291
        %v305 = vmul.f32 %v183, %v291
        %v306 = vmul.f32 %v184, %v291
        %v307 = vmul.f32 %v185, %v291
        %v308 = vmul.f32 %v186, %v291
        %v309 = vmul.f32 %v187, %v291
        %v310 = vmul.f32 %v188, %v291
        %v311 = vmul.f32 %v189, %v291
        %v312 = vmul.f32 %v190, %v291
        %v313 = vmul.f32 %v191, %v291
        %v314 = vmul.f32 %v192, %v291
        %v315 = vmul.f32 %v193, %v291
        %v316 = vmul.f32 %v194, %v291
        %v317 = vmul.f32 %v195, %v291
        %v318 = vmul.f32 %v196, %v291
        %v319 = vmul.f32 %v197, %v291
        %v320 = vmul.f32 %v198, %v291
        %v321 = vmul.f32 %v199, %v291
        %v322 = vmul.f32 %v200, %v291
        %v323 = vmul.f32 %v201, %v291
        %v324 = vmul.f32 %v202, %v291
        %v325 = vmul.f32 %v203, %v291
        %v326 = vmul.f32 %v204, %v291
        %v327 = vmul.f32 %v205, %v291
        %v328 = vmul.f32 %v206, %v291
        %v329 = vmul.f32 %v207, %v291
        %v330 = vmul.f32 %v208, %v291
        %v331 = vmul.f32 %v209, %v291
        %v332 = vmul.f32 %v210, %v291
        %v333 = vmul.f32 %v211, %v291
        %v334 = vmul.f32 %v212, %v291
        %v335 = vmul.f32 %v213, %v291
        %v336 = vmul.f32 %v214, %v291
        %v337 = vmul.f32 %v215, %v291
        %v338 = vmul.f32 %v216, %v291
        %v339 = vmul.f32 %v217, %v291
        %vm388 = vcmask 1046528
        %v389 = vrot.slane %v292, 1
        %v390 = vrot.slane %v293, 1
        %v391 = vsel %vm388, %v389, %v390
        %v392 = vrot.slane %v294, 1
        %v393 = vsel %vm388, %v390, %v392
        %v394 = vrot.slane %v295, 1
        %v395 = vrot.slane %v296, 1
        %v396 = vsel %vm388, %v394, %v395
        %v397 = vrot.slane %v297, 1
        %v398 = vsel %vm388, %v395, %v397
        %v399 = vrot.slane %v298, 1
        %v400 = vrot.slane %v299, 1
        %v401 = vsel %vm388, %v399, %v400
        %v402 = vrot.slane %v300, 1
        %v403 = vsel %vm388, %v400, %v402
        %v404 = vrot.slane %v301, 1
        %v405 = vrot.slane %v302, 1
        %v406 = vsel %vm388, %v404, %v405
        %v407 = vrot.slane %v303, 1
        %v408 = vsel %vm388, %v405, %v407
        %v409 = vrot.slane %v304, 1
        %v410 = vrot.slane %v305, 1
        %v411 = vsel %vm388, %v409, %v410
        %v412 = vrot.slane %v306, 1
        %v413 = vsel %vm388, %v410, %v412
        %v414 = vrot.slane %v307, 1
        %v415 = vrot.slane %v308, 1
        %v416 = vsel %vm388, %v414, %v415
        %v417 = vrot.slane %v309, 1
        %v418 = vsel %vm388, %v415, %v417
        %v419 = vrot.slane %v310, 1
        %v420 = vrot.slane %v311, 1
        %v421 = vsel %vm388, %v419, %v420
        %v422 = vrot.slane %v312, 1
        %v423 = vsel %vm388, %v420, %v422
        %v424 = vrot.slane %v313, 1
        %v425 = vrot.slane %v314, 1
        %v426 = vsel %vm388, %v424, %v425
        %v427 = vrot.slane %v315, 1
        %v428 = vsel %vm388, %v425, %v427
        %v429 = vrot.slane %v316, 1
        %v430 = vrot.slane %v317, 1
        %v431 = vsel %vm388, %v429, %v430
        %v432 = vrot.slane %v318, 1
        %v433 = vsel %vm388, %v430, %v432
        %v434 = vrot.slane %v319, 1
        %v435 = vrot.slane %v320, 1
        %v436 = vsel %vm388, %v434, %v435
        %v437 = vrot.slane %v321, 1
        %v438 = vsel %vm388, %v435, %v437
        %v439 = vrot.slane %v322, 1
        %v440 = vrot.slane %v323, 1
        %v441 = vsel %vm388, %v439, %v440
        %v442 = vrot.slane %v324, 1
        %v443 = vsel %vm388, %v440, %v442
        %v444 = vrot.slane %v325, 1
        %v445 = vrot.slane %v326, 1
        %v446 = vsel %vm388, %v444, %v445
        %v447 = vrot.slane %v327, 1
        %v448 = vsel %vm388, %v445, %v447
        %v449 = vrot.slane %v328, 1
        %v450 = vrot.slane %v329, 1
        %v451 = vsel %vm388, %v449, %v450
        %v452 = vrot.slane %v330, 1
        %v453 = vsel %vm388, %v450, %v452
        %v454 = vrot.slane %v331, 1
        %v455 = vrot.slane %v332, 1
        %v456 = vsel %vm388, %v454, %v455
        %v457 = vrot.slane %v333, 1
        %v458 = vsel %vm388, %v455, %v457
        %v459 = vrot.slane %v334, 1
        %v460 = vrot.slane %v335, 1
        %v461 = vsel %vm388, %v459, %v460
        %v462 = vrot.slane %v336, 1
        %v463 = vsel %vm388, %v460, %v462
        %v464 = vrot.slane %v337, 1
        %v465 = vrot.slane %v338, 1
        %v466 = vsel %vm388, %v464, %v465
        %v467 = vrot.slane %v339, 1
        %v468 = vsel %vm388, %v465, %v467
        %v501 = vadd.f32 %v259, %v391
        %v502 = vadd.f32 %v260, %v393
        %v503 = vadd.f32 %v261, %v396
        %v504 = vadd.f32 %v262, %v398
        %v505 = vadd.f32 %v263, %v401
        %v506 = vadd.f32 %v264, %v403
        %v507 = vadd.f32 %v265, %v406
        %v508 = vadd.f32 %v266, %v408
        %v509 = vadd.f32 %v267, %v411
        %v510 = vadd.f32 %v268, %v413
        %v511 = vadd.f32 %v269, %v416
        %v512 = vadd.f32 %v270, %v418
        %v513 = vadd.f32 %v271, %v421
        %v514 = vadd.f32 %v272, %v423
        %v515 = vadd.f32 %v273, %v426
        %v516 = vadd.f32 %v274, %v428
        %v517 = vadd.f32 %v275, %v431
        %v518 = vadd.f32 %v276, %v433
        %v519 = vadd.f32 %v277, %v436
        %v520 = vadd.f32 %v278, %v438
        %v521 = vadd.f32 %v279, %v441
        %v522 = vadd.f32 %v280, %v443
        %v523 = vadd.f32 %v281, %v446
        %v524 = vadd.f32 %v282, %v448
        %v525 = vadd.f32 %v283, %v451
        %v526 = vadd.f32 %v284, %v453
        %v527 = vadd.f32 %v285, %v456
        %v528 = vadd.f32 %v286, %v458
        %v529 = vadd.f32 %v287, %v461
        %v530 = vadd.f32 %v288, %v463
        %v531 = vadd.f32 %v289, %v466
        %v532 = vadd.f32 %v290, %v468
        %v533 = vperm.slane %v224, 2
        %v534 = vmul.f32 %v170, %v533
        %v535 = vmul.f32 %v171, %v533
        %v536 = vmul.f32 %v172, %v533
        %v537 = vmul.f32 %v173, %v533
        %v538 = vmul.f32 %v174, %v533
        %v539 = vmul.f32 %v175, %v533
        %v540 = vmul.f32 %v176, %v533
        %v541 = vmul.f32 %v177, %v533
        %v542 = vmul.f32 %v178, %v533
        %v543 = vmul.f32 %v179, %v533
        %v544 = vmul.f32 %v180, %v533
        %v545 = vmul.f32 %v181, %v533
        %v546 = vmul.f32 %v182, %v533
        %v547 = vmul.f32 %v183, %v533
        %v548 = vmul.f32 %v184, %v533
        %v549 = vmul.f32 %v185, %v533
        %v550 = vmul.f32 %v186, %v533
        %v551 = vmul.f32 %v187, %v533
        %v552 = vmul.f32 %v188, %v533
        %v553 = vmul.f32 %v189, %v533
        %v554 = vmul.f32 %v190, %v533
        %v555 = vmul.f32 %v191, %v533
        %v556 = vmul.f32 %v192, %v533
        %v557 = vmul.f32 %v193, %v533
        %v558 = vmul.f32 %v194, %v533
        %v559 = vmul.f32 %v195, %v533
        %v560 = vmul.f32 %v196, %v533
        %v561 = vmul.f32 %v197, %v533
        %v562 = vmul.f32 %v198, %v533
        %v563 = vmul.f32 %v199, %v533
        %v564 = vmul.f32 %v200, %v533
        %v565 = vmul.f32 %v201, %v533
        %v566 = vmul.f32 %v202, %v533
        %v567 = vmul.f32 %v203, %v533
        %v568 = vmul.f32 %v204, %v533
        %v569 = vmul.f32 %v205, %v533
        %v570 = vmul.f32 %v206, %v533
        %v571 = vmul.f32 %v207, %v533
        %v572 = vmul.f32 %v208, %v533
        %v573 = vmul.f32 %v209, %v533
        %v574 = vmul.f32 %v210, %v533
        %v575 = vmul.f32 %v211, %v533
        %v576 = vmul.f32 %v212, %v533
        %v577 = vmul.f32 %v213, %v533
        %v578 = vmul.f32 %v214, %v533
        %v579 = vmul.f32 %v215, %v533
        %v580 = vmul.f32 %v216, %v533
        %v581 = vmul.f32 %v217, %v533
        %vm630 = vcmask 1045504
        %v631 = vrot.slane %v534, 2
        %v632 = vrot.slane %v535, 2
        %v633 = vsel %vm630, %v631, %v632
        %v634 = vrot.slane %v536, 2
        %v635 = vsel %vm630, %v632, %v634
        %v636 = vrot.slane %v537, 2
        %v637 = vrot.slane %v538, 2
        %v638 = vsel %vm630, %v636, %v637
        %v639 = vrot.slane %v539, 2
        %v640 = vsel %vm630, %v637, %v639
        %v641 = vrot.slane %v540, 2
        %v642 = vrot.slane %v541, 2
        %v643 = vsel %vm630, %v641, %v642
        %v644 = vrot.slane %v542, 2
        %v645 = vsel %vm630, %v642, %v644
        %v646 = vrot.slane %v543, 2
        %v647 = vrot.slane %v544, 2
        %v648 = vsel %vm630, %v646, %v647
        %v649 = vrot.slane %v545, 2
        %v650 = vsel %vm630, %v647, %v649
        %v651 = vrot.slane %v546, 2
        %v652 = vrot.slane %v547, 2
        %v653 = vsel %vm630, %v651, %v652
        %v654 = vrot.slane %v548, 2
        %v655 = vsel %vm630, %v652, %v654
        %v656 = vrot.slane %v549, 2
        %v657 = vrot.slane %v550, 2
        %v658 = vsel %vm630, %v656, %v657
        %v659 = vrot.slane %v551, 2
        %v660 = vsel %vm630, %v657, %v659
        %v661 = vrot.slane %v552, 2
        %v662 = vrot.slane %v553, 2
        %v663 = vsel %vm630, %v661, %v662
        %v664 = vrot.slane %v554, 2
        %v665 = vsel %vm630, %v662, %v664
        %v666 = vrot.slane %v555, 2
        %v667 = vrot.slane %v556, 2
        %v668 = vsel %vm630, %v666, %v667
        %v669 = vrot.slane %v557, 2
        %v670 = vsel %vm630, %v667, %v669
        %v671 = vrot.slane %v558, 2
        %v672 = vrot.slane %v559, 2
        %v673 = vsel %vm630, %v671, %v672
        %v674 = vrot.slane %v560, 2
        %v675 = vsel %vm630, %v672, %v674
        %v676 = vrot.slane %v561, 2
        %v677 = vrot.slane %v562, 2
        %v678 = vsel %vm630, %v676, %v677
        %v679 = vrot.slane %v563, 2
        %v680 = vsel %vm630, %v677, %v679
        %v681 = vrot.slane %v564, 2
        %v682 = vrot.slane %v565, 2
        %v683 = vsel %vm630, %v681, %v682
        %v684 = vrot.slane %v566, 2
        %v685 = vsel %vm630, %v682, %v684
        %v686 = vrot.slane %v567, 2
        %v687 = vrot.slane %v568, 2
        %v688 = vsel %vm630, %v686, %v687
        %v689 = vrot.slane %v569, 2
        %v690 = vsel %vm630, %v687, %v689
        %v691 = vrot.slane %v570, 2
        %v692 = vrot.slane %v571, 2
        %v693 = vsel %vm630, %v691, %v692
        %v694 = vrot.slane %v572, 2
        %v695 = vsel %vm630, %v692, %v694
        %v696 = vrot.slane %v573, 2
        %v697 = vrot.slane %v574, 2
        %v698 = vsel %vm630, %v696, %v697
        %v699 = vrot.slane %v575, 2
        %v700 = vsel %vm630, %v697, %v699
        %v701 = vrot.slane %v576, 2
        %v702 = vrot.slane %v577, 2
        %v703 = vsel %vm630, %v701, %v702
        %v704 = vrot.slane %v578, 2
        %v705 = vsel %vm630, %v702, %v704
        %v706 = vrot.slane %v579, 2
        %v707 = vrot.slane %v580, 2
        %v708 = vsel %vm630, %v706, %v707
        %v709 = vrot.slane %v581, 2
        %v710 = vsel %vm630, %v707, %v709
        %v743 = vadd.f32 %v501, %v633
        %v744 = vadd.f32 %v502, %v635
        %v745 = vadd.f32 %v503, %v638
        %v746 = vadd.f32 %v504, %v640
        %v747 = vadd.f32 %v505, %v643
        %v748 = vadd.f32 %v506, %v645
        %v749 = vadd.f32 %v507, %v648
        %v750 = vadd.f32 %v508, %v650
        %v751 = vadd.f32 %v509, %v653
        %v752 = vadd.f32 %v510, %v655
        %v753 = vadd.f32 %v511, %v658
        %v754 = vadd.f32 %v512, %v660
        %v755 = vadd.f32 %v513, %v663
        %v756 = vadd.f32 %v514, %v665
        %v757 = vadd.f32 %v515, %v668
        %v758 = vadd.f32 %v516, %v670
        %v759 = vadd.f32 %v517, %v673
        %v760 = vadd.f32 %v518, %v675
        %v761 = vadd.f32 %v519, %v678
        %v762 = vadd.f32 %v520, %v680
        %v763 = vadd.f32 %v521, %v683
        %v764 = vadd.f32 %v522, %v685
        %v765 = vadd.f32 %v523, %v688
        %v766 = vadd.f32 %v524, %v690
        %v767 = vadd.f32 %v525, %v693
        %v768 = vadd.f32 %v526, %v695
        %v769 = vadd.f32 %v527, %v698
        %v770 = vadd.f32 %v528, %v700
        %v771 = vadd.f32 %v529, %v703
        %v772 = vadd.f32 %v530, %v705
        %v773 = vadd.f32 %v531, %v708
        %v774 = vadd.f32 %v532, %v710
        %v775 = vperm.slane %v224, 3
        %v776 = vmul.f32 %v173, %v775
        %v777 = vmul.f32 %v174, %v775
        %v778 = vmul.f32 %v176, %v775
        %v779 = vmul.f32 %v177, %v775
        %v780 = vmul.f32 %v179, %v775
        %v781 = vmul.f32 %v180, %v775
        %v782 = vmul.f32 %v182, %v775
        %v783 = vmul.f32 %v183, %v775
        %v784 = vmul.f32 %v185, %v775
        %v785 = vmul.f32 %v186, %v775
        %v786 = vmul.f32 %v188, %v775
        %v787 = vmul.f32 %v189, %v775
        %v788 = vmul.f32 %v191, %v775
        %v789 = vmul.f32 %v192, %v775
        %v790 = vmul.f32 %v194, %v775
        %v791 = vmul.f32 %v195, %v775
        %v792 = vmul.f32 %v197, %v775
        %v793 = vmul.f32 %v198, %v775
        %v794 = vmul.f32 %v200, %v775
        %v795 = vmul.f32 %v201, %v775
        %v796 = vmul.f32 %v203, %v775
        %v797 = vmul.f32 %v204, %v775
        %v798 = vmul.f32 %v206, %v775
        %v799 = vmul.f32 %v207, %v775
        %v800 = vmul.f32 %v209, %v775
        %v801 = vmul.f32 %v210, %v775
        %v802 = vmul.f32 %v212, %v775
        %v803 = vmul.f32 %v213, %v775
        %v804 = vmul.f32 %v215, %v775
        %v805 = vmul.f32 %v216, %v775
        %v806 = vmul.f32 %v218, %v775
        %v807 = vmul.f32 %v219, %v775
        %v808 = vadd.f32 %v743, %v776
        %v809 = vadd.f32 %v744, %v777
        %v810 = vadd.f32 %v745, %v778
        %v811 = vadd.f32 %v746, %v779
        %v812 = vadd.f32 %v747, %v780
        %v813 = vadd.f32 %v748, %v781
        %v814 = vadd.f32 %v749, %v782
        %v815 = vadd.f32 %v750, %v783
        %v816 = vadd.f32 %v751, %v784
        %v817 = vadd.f32 %v752, %v785
        %v818 = vadd.f32 %v753, %v786
        %v819 = vadd.f32 %v754, %v787
        %v820 = vadd.f32 %v755, %v788
        %v821 = vadd.f32 %v756, %v789
        %v822 = vadd.f32 %v757, %v790
        %v823 = vadd.f32 %v758, %v791
        %v824 = vadd.f32 %v759, %v792
        %v825 = vadd.f32 %v760, %v793
        %v826 = vadd.f32 %v761, %v794
        %v827 = vadd.f32 %v762, %v795
        %v828 = vadd.f32 %v763, %v796
        %v829 = vadd.f32 %v764, %v797
        %v830 = vadd.f32 %v765, %v798
        %v831 = vadd.f32 %v766, %v799
        %v832 = vadd.f32 %v767, %v800
        %v833 = vadd.f32 %v768, %v801
        %v834 = vadd.f32 %v769, %v802
        %v835 = vadd.f32 %v770, %v803
        %v836 = vadd.f32 %v771, %v804
        %v837 = vadd.f32 %v772, %v805
        %v838 = vadd.f32 %v773, %v806
        %v839 = vadd.f32 %v774, %v807
        %v840 = vperm.slane %v224, 4
        %v841 = vmul.f32 %v173, %v840
        %v842 = vmul.f32 %v174, %v840
        %v843 = vmul.f32 %v175, %v840
        %v844 = vmul.f32 %v176, %v840
        %v845 = vmul.f32 %v177, %v840
        %v846 = vmul.f32 %v178, %v840
        %v847 = vmul.f32 %v179, %v840
        %v848 = vmul.f32 %v180, %v840
        %v849 = vmul.f32 %v181, %v840
        %v850 = vmul.f32 %v182, %v840
        %v851 = vmul.f32 %v183, %v840
        %v852 = vmul.f32 %v184, %v840
        %v853 = vmul.f32 %v185, %v840
        %v854 = vmul.f32 %v186, %v840
        %v855 = vmul.f32 %v187, %v840
        %v856 = vmul.f32 %v188, %v840
        %v857 = vmul.f32 %v189, %v840
        %v858 = vmul.f32 %v190, %v840
        %v859 = vmul.f32 %v191, %v840
        %v860 = vmul.f32 %v192, %v840
        %v861 = vmul.f32 %v193, %v840
        %v862 = vmul.f32 %v194, %v840
        %v863 = vmul.f32 %v195, %v840
        %v864 = vmul.f32 %v196, %v840
        %v865 = vmul.f32 %v197, %v840
        %v866 = vmul.f32 %v198, %v840
        %v867 = vmul.f32 %v199, %v840
        %v868 = vmul.f32 %v200, %v840
        %v869 = vmul.f32 %v201, %v840
        %v870 = vmul.f32 %v202, %v840
        %v871 = vmul.f32 %v203, %v840
        %v872 = vmul.f32 %v204, %v840
        %v873 = vmul.f32 %v205, %v840
        %v874 = vmul.f32 %v206, %v840
        %v875 = vmul.f32 %v207, %v840
        %v876 = vmul.f32 %v208, %v840
        %v877 = vmul.f32 %v209, %v840
        %v878 = vmul.f32 %v210, %v840
        %v879 = vmul.f32 %v211, %v840
        %v880 = vmul.f32 %v212, %v840
        %v881 = vmul.f32 %v213, %v840
        %v882 = vmul.f32 %v214, %v840
        %v883 = vmul.f32 %v215, %v840
        %v884 = vmul.f32 %v216, %v840
        %v885 = vmul.f32 %v217, %v840
        %v886 = vmul.f32 %v218, %v840
        %v887 = vmul.f32 %v219, %v840
        %v888 = vmul.f32 %v220, %v840
        %v937 = vrot.slane %v841, 1
        %v938 = vrot.slane %v842, 1
        %v939 = vsel %vm388, %v937, %v938
        %v940 = vrot.slane %v843, 1
        %v941 = vsel %vm388, %v938, %v940
        %v942 = vrot.slane %v844, 1
        %v943 = vrot.slane %v845, 1
        %v944 = vsel %vm388, %v942, %v943
        %v945 = vrot.slane %v846, 1
        %v946 = vsel %vm388, %v943, %v945
        %v947 = vrot.slane %v847, 1
        %v948 = vrot.slane %v848, 1
        %v949 = vsel %vm388, %v947, %v948
        %v950 = vrot.slane %v849, 1
        %v951 = vsel %vm388, %v948, %v950
        %v952 = vrot.slane %v850, 1
        %v953 = vrot.slane %v851, 1
        %v954 = vsel %vm388, %v952, %v953
        %v955 = vrot.slane %v852, 1
        %v956 = vsel %vm388, %v953, %v955
        %v957 = vrot.slane %v853, 1
        %v958 = vrot.slane %v854, 1
        %v959 = vsel %vm388, %v957, %v958
        %v960 = vrot.slane %v855, 1
        %v961 = vsel %vm388, %v958, %v960
        %v962 = vrot.slane %v856, 1
        %v963 = vrot.slane %v857, 1
        %v964 = vsel %vm388, %v962, %v963
        %v965 = vrot.slane %v858, 1
        %v966 = vsel %vm388, %v963, %v965
        %v967 = vrot.slane %v859, 1
        %v968 = vrot.slane %v860, 1
        %v969 = vsel %vm388, %v967, %v968
        %v970 = vrot.slane %v861, 1
        %v971 = vsel %vm388, %v968, %v970
        %v972 = vrot.slane %v862, 1
        %v973 = vrot.slane %v863, 1
        %v974 = vsel %vm388, %v972, %v973
        %v975 = vrot.slane %v864, 1
        %v976 = vsel %vm388, %v973, %v975
        %v977 = vrot.slane %v865, 1
        %v978 = vrot.slane %v866, 1
        %v979 = vsel %vm388, %v977, %v978
        %v980 = vrot.slane %v867, 1
        %v981 = vsel %vm388, %v978, %v980
        %v982 = vrot.slane %v868, 1
        %v983 = vrot.slane %v869, 1
        %v984 = vsel %vm388, %v982, %v983
        %v985 = vrot.slane %v870, 1
        %v986 = vsel %vm388, %v983, %v985
        %v987 = vrot.slane %v871, 1
        %v988 = vrot.slane %v872, 1
        %v989 = vsel %vm388, %v987, %v988
        %v990 = vrot.slane %v873, 1
        %v991 = vsel %vm388, %v988, %v990
        %v992 = vrot.slane %v874, 1
        %v993 = vrot.slane %v875, 1
        %v994 = vsel %vm388, %v992, %v993
        %v995 = vrot.slane %v876, 1
        %v996 = vsel %vm388, %v993, %v995
        %v997 = vrot.slane %v877, 1
        %v998 = vrot.slane %v878, 1
        %v999 = vsel %vm388, %v997, %v998
        %v1000 = vrot.slane %v879, 1
        %v1001 = vsel %vm388, %v998, %v1000
        %v1002 = vrot.slane %v880, 1
        %v1003 = vrot.slane %v881, 1
        %v1004 = vsel %vm388, %v1002, %v1003
        %v1005 = vrot.slane %v882, 1
        %v1006 = vsel %vm388, %v1003, %v1005
        %v1007 = vrot.slane %v883, 1
        %v1008 = vrot.slane %v884, 1
        %v1009 = vsel %vm388, %v1007, %v1008
        %v1010 = vrot.slane %v885, 1
        %v1011 = vsel %vm388, %v1008, %v1010
        %v1012 = vrot.slane %v886, 1
        %v1013 = vrot.slane %v887, 1
        %v1014 = vsel %vm388, %v1012, %v1013
        %v1015 = vrot.slane %v888, 1
        %v1016 = vsel %vm388, %v1013, %v1015
        %v1049 = vadd.f32 %v808, %v939
        %v1050 = vadd.f32 %v809, %v941
        %v1051 = vadd.f32 %v810, %v944
        %v1052 = vadd.f32 %v811, %v946
        %v1053 = vadd.f32 %v812, %v949
        %v1054 = vadd.f32 %v813, %v951
        %v1055 = vadd.f32 %v814, %v954
        %v1056 = vadd.f32 %v815, %v956
        %v1057 = vadd.f32 %v816, %v959
        %v1058 = vadd.f32 %v817, %v961
        %v1059 = vadd.f32 %v818, %v964
        %v1060 = vadd.f32 %v819, %v966
        %v1061 = vadd.f32 %v820, %v969
        %v1062 = vadd.f32 %v821, %v971
        %v1063 = vadd.f32 %v822, %v974
        %v1064 = vadd.f32 %v823, %v976
        %v1065 = vadd.f32 %v824, %v979
        %v1066 = vadd.f32 %v825, %v981
        %v1067 = vadd.f32 %v826, %v984
        %v1068 = vadd.f32 %v827, %v986
        %v1069 = vadd.f32 %v828, %v989
        %v1070 = vadd.f32 %v829, %v991
        %v1071 = vadd.f32 %v830, %v994
        %v1072 = vadd.f32 %v831, %v996
        %v1073 = vadd.f32 %v832, %v999
        %v1074 = vadd.f32 %v833, %v1001
        %v1075 = vadd.f32 %v834, %v1004
        %v1076 = vadd.f32 %v835, %v1006
        %v1077 = vadd.f32 %v836, %v1009
        %v1078 = vadd.f32 %v837, %v1011
        %v1079 = vadd.f32 %v838, %v1014
        %v1080 = vadd.f32 %v839, %v1016
        %v1081 = vperm.slane %v224, 5
        %v1082 = vmul.f32 %v173, %v1081
        %v1083 = vmul.f32 %v174, %v1081
        %v1084 = vmul.f32 %v175, %v1081
        %v1085 = vmul.f32 %v176, %v1081
        %v1086 = vmul.f32 %v177, %v1081
        %v1087 = vmul.f32 %v178, %v1081
        %v1088 = vmul.f32 %v179, %v1081
        %v1089 = vmul.f32 %v180, %v1081
        %v1090 = vmul.f32 %v181, %v1081
        %v1091 = vmul.f32 %v182, %v1081
        %v1092 = vmul.f32 %v183, %v1081
        %v1093 = vmul.f32 %v184, %v1081
        %v1094 = vmul.f32 %v185, %v1081
        %v1095 = vmul.f32 %v186, %v1081
        %v1096 = vmul.f32 %v187, %v1081
        %v1097 = vmul.f32 %v188, %v1081
        %v1098 = vmul.f32 %v189, %v1081
        %v1099 = vmul.f32 %v190, %v1081
        %v1100 = vmul.f32 %v191, %v1081
        %v1101 = vmul.f32 %v192, %v1081
        %v1102 = vmul.f32 %v193, %v1081
        %v1103 = vmul.f32 %v194, %v1081
        %v1104 = vmul.f32 %v195, %v1081
        %v1105 = vmul.f32 %v196, %v1081
        %v1106 = vmul.f32 %v197, %v1081
        %v1107 = vmul.f32 %v198, %v1081
        %v1108 = vmul.f32 %v199, %v1081
        %v1109 = vmul.f32 %v200, %v1081
        %v1110 = vmul.f32 %v201, %v1081
        %v1111 = vmul.f32 %v202, %v1081
        %v1112 = vmul.f32 %v203, %v1081
        %v1113 = vmul.f32 %v204, %v1081
        %v1114 = vmul.f32 %v205, %v1081
        %v1115 = vmul.f32 %v206, %v1081
        %v1116 = vmul.f32 %v207, %v1081
        %v1117 = vmul.f32 %v208, %v1081
        %v1118 = vmul.f32 %v209, %v1081
        %v1119 = vmul.f32 %v210, %v1081
        %v1120 = vmul.f32 %v211, %v1081
        %v1121 = vmul.f32 %v212, %v1081
        %v1122 = vmul.f32 %v213, %v1081
        %v1123 = vmul.f32 %v214, %v1081
        %v1124 = vmul.f32 %v215, %v1081
        %v1125 = vmul.f32 %v216, %v1081
        %v1126 = vmul.f32 %v217, %v1081
        %v1127 = vmul.f32 %v218, %v1081
        %v1128 = vmul.f32 %v219, %v1081
        %v1129 = vmul.f32 %v220, %v1081
        %v1178 = vrot.slane %v1082, 2
        %v1179 = vrot.slane %v1083, 2
        %v1180 = vsel %vm630, %v1178, %v1179
        %v1181 = vrot.slane %v1084, 2
        %v1182 = vsel %vm630, %v1179, %v1181
        %v1183 = vrot.slane %v1085, 2
        %v1184 = vrot.slane %v1086, 2
        %v1185 = vsel %vm630, %v1183, %v1184
        %v1186 = vrot.slane %v1087, 2
        %v1187 = vsel %vm630, %v1184, %v1186
        %v1188 = vrot.slane %v1088, 2
        %v1189 = vrot.slane %v1089, 2
        %v1190 = vsel %vm630, %v1188, %v1189
        %v1191 = vrot.slane %v1090, 2
        %v1192 = vsel %vm630, %v1189, %v1191
        %v1193 = vrot.slane %v1091, 2
        %v1194 = vrot.slane %v1092, 2
        %v1195 = vsel %vm630, %v1193, %v1194
        %v1196 = vrot.slane %v1093, 2
        %v1197 = vsel %vm630, %v1194, %v1196
        %v1198 = vrot.slane %v1094, 2
        %v1199 = vrot.slane %v1095, 2
        %v1200 = vsel %vm630, %v1198, %v1199
        %v1201 = vrot.slane %v1096, 2
        %v1202 = vsel %vm630, %v1199, %v1201
        %v1203 = vrot.slane %v1097, 2
        %v1204 = vrot.slane %v1098, 2
        %v1205 = vsel %vm630, %v1203, %v1204
        %v1206 = vrot.slane %v1099, 2
        %v1207 = vsel %vm630, %v1204, %v1206
        %v1208 = vrot.slane %v1100, 2
        %v1209 = vrot.slane %v1101, 2
        %v1210 = vsel %vm630, %v1208, %v1209
        %v1211 = vrot.slane %v1102, 2
        %v1212 = vsel %vm630, %v1209, %v1211
        %v1213 = vrot.slane %v1103, 2
        %v1214 = vrot.slane %v1104, 2
        %v1215 = vsel %vm630, %v1213, %v1214
        %v1216 = vrot.slane %v1105, 2
        %v1217 = vsel %vm630, %v1214, %v1216
        %v1218 = vrot.slane %v1106, 2
        %v1219 = vrot.slane %v1107, 2
        %v1220 = vsel %vm630, %v1218, %v1219
        %v1221 = vrot.slane %v1108, 2
        %v1222 = vsel %vm630, %v1219, %v1221
        %v1223 = vrot.slane %v1109, 2
        %v1224 = vrot.slane %v1110, 2
        %v1225 = vsel %vm630, %v1223, %v1224
        %v1226 = vrot.slane %v1111, 2
        %v1227 = vsel %vm630, %v1224, %v1226
        %v1228 = vrot.slane %v1112, 2
        %v1229 = vrot.slane %v1113, 2
        %v1230 = vsel %vm630, %v1228, %v1229
        %v1231 = vrot.slane %v1114, 2
        %v1232 = vsel %vm630, %v1229, %v1231
        %v1233 = vrot.slane %v1115, 2
        %v1234 = vrot.slane %v1116, 2
        %v1235 = vsel %vm630, %v1233, %v1234
        %v1236 = vrot.slane %v1117, 2
        %v1237 = vsel %vm630, %v1234, %v1236
        %v1238 = vrot.slane %v1118, 2
        %v1239 = vrot.slane %v1119, 2
        %v1240 = vsel %vm630, %v1238, %v1239
        %v1241 = vrot.slane %v1120, 2
        %v1242 = vsel %vm630, %v1239, %v1241
        %v1243 = vrot.slane %v1121, 2
        %v1244 = vrot.slane %v1122, 2
        %v1245 = vsel %vm630, %v1243, %v1244
        %v1246 = vrot.slane %v1123, 2
        %v1247 = vsel %vm630, %v1244, %v1246
        %v1248 = vrot.slane %v1124, 2
        %v1249 = vrot.slane %v1125, 2
        %v1250 = vsel %vm630, %v1248, %v1249
        %v1251 = vrot.slane %v1126, 2
        %v1252 = vsel %vm630, %v1249, %v1251
        %v1253 = vrot.slane %v1127, 2
        %v1254 = vrot.slane %v1128, 2
        %v1255 = vsel %vm630, %v1253, %v1254
        %v1256 = vrot.slane %v1129, 2
        %v1257 = vsel %vm630, %v1254, %v1256
        %v1290 = vadd.f32 %v1049, %v1180
        %v1291 = vadd.f32 %v1050, %v1182
        %v1292 = vadd.f32 %v1051, %v1185
        %v1293 = vadd.f32 %v1052, %v1187
        %v1294 = vadd.f32 %v1053, %v1190
        %v1295 = vadd.f32 %v1054, %v1192
        %v1296 = vadd.f32 %v1055, %v1195
        %v1297 = vadd.f32 %v1056, %v1197
        %v1298 = vadd.f32 %v1057, %v1200
        %v1299 = vadd.f32 %v1058, %v1202
        %v1300 = vadd.f32 %v1059, %v1205
        %v1301 = vadd.f32 %v1060, %v1207
        %v1302 = vadd.f32 %v1061, %v1210
        %v1303 = vadd.f32 %v1062, %v1212
        %v1304 = vadd.f32 %v1063, %v1215
        %v1305 = vadd.f32 %v1064, %v1217
        %v1306 = vadd.f32 %v1065, %v1220
        %v1307 = vadd.f32 %v1066, %v1222
        %v1308 = vadd.f32 %v1067, %v1225
        %v1309 = vadd.f32 %v1068, %v1227
        %v1310 = vadd.f32 %v1069, %v1230
        %v1311 = vadd.f32 %v1070, %v1232
        %v1312 = vadd.f32 %v1071, %v1235
        %v1313 = vadd.f32 %v1072, %v1237
        %v1314 = vadd.f32 %v1073, %v1240
        %v1315 = vadd.f32 %v1074, %v1242
        %v1316 = vadd.f32 %v1075, %v1245
        %v1317 = vadd.f32 %v1076, %v1247
        %v1318 = vadd.f32 %v1077, %v1250
        %v1319 = vadd.f32 %v1078, %v1252
        %v1320 = vadd.f32 %v1079, %v1255
        %v1321 = vadd.f32 %v1080, %v1257
        %v1322 = vperm.slane %v224, 6
        %v1323 = vmul.f32 %v176, %v1322
        %v1324 = vmul.f32 %v177, %v1322
        %v1325 = vmul.f32 %v179, %v1322
        %v1326 = vmul.f32 %v180, %v1322
        %v1327 = vmul.f32 %v182, %v1322
        %v1328 = vmul.f32 %v183, %v1322
        %v1329 = vmul.f32 %v185, %v1322
        %v1330 = vmul.f32 %v186, %v1322
        %v1331 = vmul.f32 %v188, %v1322
        %v1332 = vmul.f32 %v189, %v1322
        %v1333 = vmul.f32 %v191, %v1322
        %v1334 = vmul.f32 %v192, %v1322
        %v1335 = vmul.f32 %v194, %v1322
        %v1336 = vmul.f32 %v195, %v1322
        %v1337 = vmul.f32 %v197, %v1322
        %v1338 = vmul.f32 %v198, %v1322
        %v1339 = vmul.f32 %v200, %v1322
        %v1340 = vmul.f32 %v201, %v1322
        %v1341 = vmul.f32 %v203, %v1322
        %v1342 = vmul.f32 %v204, %v1322
        %v1343 = vmul.f32 %v206, %v1322
        %v1344 = vmul.f32 %v207, %v1322
        %v1345 = vmul.f32 %v209, %v1322
        %v1346 = vmul.f32 %v210, %v1322
        %v1347 = vmul.f32 %v212, %v1322
        %v1348 = vmul.f32 %v213, %v1322
        %v1349 = vmul.f32 %v215, %v1322
        %v1350 = vmul.f32 %v216, %v1322
        %v1351 = vmul.f32 %v218, %v1322
        %v1352 = vmul.f32 %v219, %v1322
        %v1353 = vmul.f32 %v221, %v1322
        %v1354 = vmul.f32 %v222, %v1322
        %v1355 = vadd.f32 %v1290, %v1323
        %v1356 = vadd.f32 %v1291, %v1324
        %v1357 = vadd.f32 %v1292, %v1325
        %v1358 = vadd.f32 %v1293, %v1326
        %v1359 = vadd.f32 %v1294, %v1327
        %v1360 = vadd.f32 %v1295, %v1328
        %v1361 = vadd.f32 %v1296, %v1329
        %v1362 = vadd.f32 %v1297, %v1330
        %v1363 = vadd.f32 %v1298, %v1331
        %v1364 = vadd.f32 %v1299, %v1332
        %v1365 = vadd.f32 %v1300, %v1333
        %v1366 = vadd.f32 %v1301, %v1334
        %v1367 = vadd.f32 %v1302, %v1335
        %v1368 = vadd.f32 %v1303, %v1336
        %v1369 = vadd.f32 %v1304, %v1337
        %v1370 = vadd.f32 %v1305, %v1338
        %v1371 = vadd.f32 %v1306, %v1339
        %v1372 = vadd.f32 %v1307, %v1340
        %v1373 = vadd.f32 %v1308, %v1341
        %v1374 = vadd.f32 %v1309, %v1342
        %v1375 = vadd.f32 %v1310, %v1343
        %v1376 = vadd.f32 %v1311, %v1344
        %v1377 = vadd.f32 %v1312, %v1345
        %v1378 = vadd.f32 %v1313, %v1346
        %v1379 = vadd.f32 %v1314, %v1347
        %v1380 = vadd.f32 %v1315, %v1348
        %v1381 = vadd.f32 %v1316, %v1349
        %v1382 = vadd.f32 %v1317, %v1350
        %v1383 = vadd.f32 %v1318, %v1351
        %v1384 = vadd.f32 %v1319, %v1352
        %v1385 = vadd.f32 %v1320, %v1353
        %v1386 = vadd.f32 %v1321, %v1354
        %v1387 = vperm.slane %v224, 7
        %v1388 = vmul.f32 %v176, %v1387
        %v1389 = vmul.f32 %v177, %v1387
        %v1390 = vmul.f32 %v178, %v1387
        %v1391 = vmul.f32 %v179, %v1387
        %v1392 = vmul.f32 %v180, %v1387
        %v1393 = vmul.f32 %v181, %v1387
        %v1394 = vmul.f32 %v182, %v1387
        %v1395 = vmul.f32 %v183, %v1387
        %v1396 = vmul.f32 %v184, %v1387
        %v1397 = vmul.f32 %v185, %v1387
        %v1398 = vmul.f32 %v186, %v1387
        %v1399 = vmul.f32 %v187, %v1387
        %v1400 = vmul.f32 %v188, %v1387
        %v1401 = vmul.f32 %v189, %v1387
        %v1402 = vmul.f32 %v190, %v1387
        %v1403 = vmul.f32 %v191, %v1387
        %v1404 = vmul.f32 %v192, %v1387
        %v1405 = vmul.f32 %v193, %v1387
        %v1406 = vmul.f32 %v194, %v1387
        %v1407 = vmul.f32 %v195, %v1387
        %v1408 = vmul.f32 %v196, %v1387
        %v1409 = vmul.f32 %v197, %v1387
        %v1410 = vmul.f32 %v198, %v1387
        %v1411 = vmul.f32 %v199, %v1387
        %v1412 = vmul.f32 %v200, %v1387
        %v1413 = vmul.f32 %v201, %v1387
        %v1414 = vmul.f32 %v202, %v1387
        %v1415 = vmul.f32 %v203, %v1387
        %v1416 = vmul.f32 %v204, %v1387
        %v1417 = vmul.f32 %v205, %v1387
        %v1418 = vmul.f32 %v206, %v1387
        %v1419 = vmul.f32 %v207, %v1387
        %v1420 = vmul.f32 %v208, %v1387
        %v1421 = vmul.f32 %v209, %v1387
        %v1422 = vmul.f32 %v210, %v1387
        %v1423 = vmul.f32 %v211, %v1387
        %v1424 = vmul.f32 %v212, %v1387
        %v1425 = vmul.f32 %v213, %v1387
        %v1426 = vmul.f32 %v214, %v1387
        %v1427 = vmul.f32 %v215, %v1387
        %v1428 = vmul.f32 %v216, %v1387
        %v1429 = vmul.f32 %v217, %v1387
        %v1430 = vmul.f32 %v218, %v1387
        %v1431 = vmul.f32 %v219, %v1387
        %v1432 = vmul.f32 %v220, %v1387
        %v1433 = vmul.f32 %v221, %v1387
        %v1434 = vmul.f32 %v222, %v1387
        %v1435 = vmul.f32 %v223, %v1387
        %v1484 = vrot.slane %v1388, 1
        %v1485 = vrot.slane %v1389, 1
        %v1486 = vsel %vm388, %v1484, %v1485
        %v1487 = vrot.slane %v1390, 1
        %v1488 = vsel %vm388, %v1485, %v1487
        %v1489 = vrot.slane %v1391, 1
        %v1490 = vrot.slane %v1392, 1
        %v1491 = vsel %vm388, %v1489, %v1490
        %v1492 = vrot.slane %v1393, 1
        %v1493 = vsel %vm388, %v1490, %v1492
        %v1494 = vrot.slane %v1394, 1
        %v1495 = vrot.slane %v1395, 1
        %v1496 = vsel %vm388, %v1494, %v1495
        %v1497 = vrot.slane %v1396, 1
        %v1498 = vsel %vm388, %v1495, %v1497
        %v1499 = vrot.slane %v1397, 1
        %v1500 = vrot.slane %v1398, 1
        %v1501 = vsel %vm388, %v1499, %v1500
        %v1502 = vrot.slane %v1399, 1
        %v1503 = vsel %vm388, %v1500, %v1502
        %v1504 = vrot.slane %v1400, 1
        %v1505 = vrot.slane %v1401, 1
        %v1506 = vsel %vm388, %v1504, %v1505
        %v1507 = vrot.slane %v1402, 1
        %v1508 = vsel %vm388, %v1505, %v1507
        %v1509 = vrot.slane %v1403, 1
        %v1510 = vrot.slane %v1404, 1
        %v1511 = vsel %vm388, %v1509, %v1510
        %v1512 = vrot.slane %v1405, 1
        %v1513 = vsel %vm388, %v1510, %v1512
        %v1514 = vrot.slane %v1406, 1
        %v1515 = vrot.slane %v1407, 1
        %v1516 = vsel %vm388, %v1514, %v1515
        %v1517 = vrot.slane %v1408, 1
        %v1518 = vsel %vm388, %v1515, %v1517
        %v1519 = vrot.slane %v1409, 1
        %v1520 = vrot.slane %v1410, 1
        %v1521 = vsel %vm388, %v1519, %v1520
        %v1522 = vrot.slane %v1411, 1
        %v1523 = vsel %vm388, %v1520, %v1522
        %v1524 = vrot.slane %v1412, 1
        %v1525 = vrot.slane %v1413, 1
        %v1526 = vsel %vm388, %v1524, %v1525
        %v1527 = vrot.slane %v1414, 1
        %v1528 = vsel %vm388, %v1525, %v1527
        %v1529 = vrot.slane %v1415, 1
        %v1530 = vrot.slane %v1416, 1
        %v1531 = vsel %vm388, %v1529, %v1530
        %v1532 = vrot.slane %v1417, 1
        %v1533 = vsel %vm388, %v1530, %v1532
        %v1534 = vrot.slane %v1418, 1
        %v1535 = vrot.slane %v1419, 1
        %v1536 = vsel %vm388, %v1534, %v1535
        %v1537 = vrot.slane %v1420, 1
        %v1538 = vsel %vm388, %v1535, %v1537
        %v1539 = vrot.slane %v1421, 1
        %v1540 = vrot.slane %v1422, 1
        %v1541 = vsel %vm388, %v1539, %v1540
        %v1542 = vrot.slane %v1423, 1
        %v1543 = vsel %vm388, %v1540, %v1542
        %v1544 = vrot.slane %v1424, 1
        %v1545 = vrot.slane %v1425, 1
        %v1546 = vsel %vm388, %v1544, %v1545
        %v1547 = vrot.slane %v1426, 1
        %v1548 = vsel %vm388, %v1545, %v1547
        %v1549 = vrot.slane %v1427, 1
        %v1550 = vrot.slane %v1428, 1
        %v1551 = vsel %vm388, %v1549, %v1550
        %v1552 = vrot.slane %v1429, 1
        %v1553 = vsel %vm388, %v1550, %v1552
        %v1554 = vrot.slane %v1430, 1
        %v1555 = vrot.slane %v1431, 1
        %v1556 = vsel %vm388, %v1554, %v1555
        %v1557 = vrot.slane %v1432, 1
        %v1558 = vsel %vm388, %v1555, %v1557
        %v1559 = vrot.slane %v1433, 1
        %v1560 = vrot.slane %v1434, 1
        %v1561 = vsel %vm388, %v1559, %v1560
        %v1562 = vrot.slane %v1435, 1
        %v1563 = vsel %vm388, %v1560, %v1562
        %v1596 = vadd.f32 %v1355, %v1486
        %v1597 = vadd.f32 %v1356, %v1488
        %v1598 = vadd.f32 %v1357, %v1491
        %v1599 = vadd.f32 %v1358, %v1493
        %v1600 = vadd.f32 %v1359, %v1496
        %v1601 = vadd.f32 %v1360, %v1498
        %v1602 = vadd.f32 %v1361, %v1501
        %v1603 = vadd.f32 %v1362, %v1503
        %v1604 = vadd.f32 %v1363, %v1506
        %v1605 = vadd.f32 %v1364, %v1508
        %v1606 = vadd.f32 %v1365, %v1511
        %v1607 = vadd.f32 %v1366, %v1513
        %v1608 = vadd.f32 %v1367, %v1516
        %v1609 = vadd.f32 %v1368, %v1518
        %v1610 = vadd.f32 %v1369, %v1521
        %v1611 = vadd.f32 %v1370, %v1523
        %v1612 = vadd.f32 %v1371, %v1526
        %v1613 = vadd.f32 %v1372, %v1528
        %v1614 = vadd.f32 %v1373, %v1531
        %v1615 = vadd.f32 %v1374, %v1533
        %v1616 = vadd.f32 %v1375, %v1536
        %v1617 = vadd.f32 %v1376, %v1538
        %v1618 = vadd.f32 %v1377, %v1541
        %v1619 = vadd.f32 %v1378, %v1543
        %v1620 = vadd.f32 %v1379, %v1546
        %v1621 = vadd.f32 %v1380, %v1548
        %v1622 = vadd.f32 %v1381, %v1551
        %v1623 = vadd.f32 %v1382, %v1553
        %v1624 = vadd.f32 %v1383, %v1556
        %v1625 = vadd.f32 %v1384, %v1558
        %v1626 = vadd.f32 %v1385, %v1561
        %v1627 = vadd.f32 %v1386, %v1563
        %v1628 = vperm.slane %v225, 0
        %v1629 = vmul.f32 %v176, %v1628
        %v1630 = vmul.f32 %v177, %v1628
        %v1631 = vmul.f32 %v178, %v1628
        %v1632 = vmul.f32 %v179, %v1628
        %v1633 = vmul.f32 %v180, %v1628
        %v1634 = vmul.f32 %v181, %v1628
        %v1635 = vmul.f32 %v182, %v1628
        %v1636 = vmul.f32 %v183, %v1628
        %v1637 = vmul.f32 %v184, %v1628
        %v1638 = vmul.f32 %v185, %v1628
        %v1639 = vmul.f32 %v186, %v1628
        %v1640 = vmul.f32 %v187, %v1628
        %v1641 = vmul.f32 %v188, %v1628
        %v1642 = vmul.f32 %v189, %v1628
        %v1643 = vmul.f32 %v190, %v1628
        %v1644 = vmul.f32 %v191, %v1628
        %v1645 = vmul.f32 %v192, %v1628
        %v1646 = vmul.f32 %v193, %v1628
        %v1647 = vmul.f32 %v194, %v1628
        %v1648 = vmul.f32 %v195, %v1628
        %v1649 = vmul.f32 %v196, %v1628
        %v1650 = vmul.f32 %v197, %v1628
        %v1651 = vmul.f32 %v198, %v1628
        %v1652 = vmul.f32 %v199, %v1628
        %v1653 = vmul.f32 %v200, %v1628
        %v1654 = vmul.f32 %v201, %v1628
        %v1655 = vmul.f32 %v202, %v1628
        %v1656 = vmul.f32 %v203, %v1628
        %v1657 = vmul.f32 %v204, %v1628
        %v1658 = vmul.f32 %v205, %v1628
        %v1659 = vmul.f32 %v206, %v1628
        %v1660 = vmul.f32 %v207, %v1628
        %v1661 = vmul.f32 %v208, %v1628
        %v1662 = vmul.f32 %v209, %v1628
        %v1663 = vmul.f32 %v210, %v1628
        %v1664 = vmul.f32 %v211, %v1628
        %v1665 = vmul.f32 %v212, %v1628
        %v1666 = vmul.f32 %v213, %v1628
        %v1667 = vmul.f32 %v214, %v1628
        %v1668 = vmul.f32 %v215, %v1628
        %v1669 = vmul.f32 %v216, %v1628
        %v1670 = vmul.f32 %v217, %v1628
        %v1671 = vmul.f32 %v218, %v1628
        %v1672 = vmul.f32 %v219, %v1628
        %v1673 = vmul.f32 %v220, %v1628
        %v1674 = vmul.f32 %v221, %v1628
        %v1675 = vmul.f32 %v222, %v1628
        %v1676 = vmul.f32 %v223, %v1628
        %v1725 = vrot.slane %v1629, 2
        %v1726 = vrot.slane %v1630, 2
        %v1727 = vsel %vm630, %v1725, %v1726
        %v1728 = vrot.slane %v1631, 2
        %v1729 = vsel %vm630, %v1726, %v1728
        %v1730 = vrot.slane %v1632, 2
        %v1731 = vrot.slane %v1633, 2
        %v1732 = vsel %vm630, %v1730, %v1731
        %v1733 = vrot.slane %v1634, 2
        %v1734 = vsel %vm630, %v1731, %v1733
        %v1735 = vrot.slane %v1635, 2
        %v1736 = vrot.slane %v1636, 2
        %v1737 = vsel %vm630, %v1735, %v1736
        %v1738 = vrot.slane %v1637, 2
        %v1739 = vsel %vm630, %v1736, %v1738
        %v1740 = vrot.slane %v1638, 2
        %v1741 = vrot.slane %v1639, 2
        %v1742 = vsel %vm630, %v1740, %v1741
        %v1743 = vrot.slane %v1640, 2
        %v1744 = vsel %vm630, %v1741, %v1743
        %v1745 = vrot.slane %v1641, 2
        %v1746 = vrot.slane %v1642, 2
        %v1747 = vsel %vm630, %v1745, %v1746
        %v1748 = vrot.slane %v1643, 2
        %v1749 = vsel %vm630, %v1746, %v1748
        %v1750 = vrot.slane %v1644, 2
        %v1751 = vrot.slane %v1645, 2
        %v1752 = vsel %vm630, %v1750, %v1751
        %v1753 = vrot.slane %v1646, 2
        %v1754 = vsel %vm630, %v1751, %v1753
        %v1755 = vrot.slane %v1647, 2
        %v1756 = vrot.slane %v1648, 2
        %v1757 = vsel %vm630, %v1755, %v1756
        %v1758 = vrot.slane %v1649, 2
        %v1759 = vsel %vm630, %v1756, %v1758
        %v1760 = vrot.slane %v1650, 2
        %v1761 = vrot.slane %v1651, 2
        %v1762 = vsel %vm630, %v1760, %v1761
        %v1763 = vrot.slane %v1652, 2
        %v1764 = vsel %vm630, %v1761, %v1763
        %v1765 = vrot.slane %v1653, 2
        %v1766 = vrot.slane %v1654, 2
        %v1767 = vsel %vm630, %v1765, %v1766
        %v1768 = vrot.slane %v1655, 2
        %v1769 = vsel %vm630, %v1766, %v1768
        %v1770 = vrot.slane %v1656, 2
        %v1771 = vrot.slane %v1657, 2
        %v1772 = vsel %vm630, %v1770, %v1771
        %v1773 = vrot.slane %v1658, 2
        %v1774 = vsel %vm630, %v1771, %v1773
        %v1775 = vrot.slane %v1659, 2
        %v1776 = vrot.slane %v1660, 2
        %v1777 = vsel %vm630, %v1775, %v1776
        %v1778 = vrot.slane %v1661, 2
        %v1779 = vsel %vm630, %v1776, %v1778
        %v1780 = vrot.slane %v1662, 2
        %v1781 = vrot.slane %v1663, 2
        %v1782 = vsel %vm630, %v1780, %v1781
        %v1783 = vrot.slane %v1664, 2
        %v1784 = vsel %vm630, %v1781, %v1783
        %v1785 = vrot.slane %v1665, 2
        %v1786 = vrot.slane %v1666, 2
        %v1787 = vsel %vm630, %v1785, %v1786
        %v1788 = vrot.slane %v1667, 2
        %v1789 = vsel %vm630, %v1786, %v1788
        %v1790 = vrot.slane %v1668, 2
        %v1791 = vrot.slane %v1669, 2
        %v1792 = vsel %vm630, %v1790, %v1791
        %v1793 = vrot.slane %v1670, 2
        %v1794 = vsel %vm630, %v1791, %v1793
        %v1795 = vrot.slane %v1671, 2
        %v1796 = vrot.slane %v1672, 2
        %v1797 = vsel %vm630, %v1795, %v1796
        %v1798 = vrot.slane %v1673, 2
        %v1799 = vsel %vm630, %v1796, %v1798
        %v1800 = vrot.slane %v1674, 2
        %v1801 = vrot.slane %v1675, 2
        %v1802 = vsel %vm630, %v1800, %v1801
        %v1803 = vrot.slane %v1676, 2
        %v1804 = vsel %vm630, %v1801, %v1803
        %v1837 = vadd.f32 %v1596, %v1727
        %v1838 = vadd.f32 %v1597, %v1729
        %v1839 = vadd.f32 %v1598, %v1732
        %v1840 = vadd.f32 %v1599, %v1734
        %v1841 = vadd.f32 %v1600, %v1737
        %v1842 = vadd.f32 %v1601, %v1739
        %v1843 = vadd.f32 %v1602, %v1742
        %v1844 = vadd.f32 %v1603, %v1744
        %v1845 = vadd.f32 %v1604, %v1747
        %v1846 = vadd.f32 %v1605, %v1749
        %v1847 = vadd.f32 %v1606, %v1752
        %v1848 = vadd.f32 %v1607, %v1754
        %v1849 = vadd.f32 %v1608, %v1757
        %v1850 = vadd.f32 %v1609, %v1759
        %v1851 = vadd.f32 %v1610, %v1762
        %v1852 = vadd.f32 %v1611, %v1764
        %v1853 = vadd.f32 %v1612, %v1767
        %v1854 = vadd.f32 %v1613, %v1769
        %v1855 = vadd.f32 %v1614, %v1772
        %v1856 = vadd.f32 %v1615, %v1774
        %v1857 = vadd.f32 %v1616, %v1777
        %v1858 = vadd.f32 %v1617, %v1779
        %v1859 = vadd.f32 %v1618, %v1782
        %v1860 = vadd.f32 %v1619, %v1784
        %v1861 = vadd.f32 %v1620, %v1787
        %v1862 = vadd.f32 %v1621, %v1789
        %v1863 = vadd.f32 %v1622, %v1792
        %v1864 = vadd.f32 %v1623, %v1794
        %v1865 = vadd.f32 %v1624, %v1797
        %v1866 = vadd.f32 %v1625, %v1799
        %v1867 = vadd.f32 %v1626, %v1802
        %v1868 = vadd.f32 %v1627, %v1804
        %v1869 = vmax.f32 %v1837, 0.0
        %v1870 = vmax.f32 %v1838, 0.0
        %v1871 = vmax.f32 %v1839, 0.0
        %v1872 = vmax.f32 %v1840, 0.0
        %v1873 = vmax.f32 %v1841, 0.0
        %v1874 = vmax.f32 %v1842, 0.0
        %v1875 = vmax.f32 %v1843, 0.0
        %v1876 = vmax.f32 %v1844, 0.0
        %v1877 = vmax.f32 %v1845, 0.0
        %v1878 = vmax.f32 %v1846, 0.0
        %v1879 = vmax.f32 %v1847, 0.0
        %v1880 = vmax.f32 %v1848, 0.0
        %v1881 = vmax.f32 %v1849, 0.0
        %v1882 = vmax.f32 %v1850, 0.0
        %v1883 = vmax.f32 %v1851, 0.0
        %v1884 = vmax.f32 %v1852, 0.0
        %v1885 = vmax.f32 %v1853, 0.0
        %v1886 = vmax.f32 %v1854, 0.0
        %v1887 = vmax.f32 %v1855, 0.0
        %v1888 = vmax.f32 %v1856, 0.0
        %v1889 = vmax.f32 %v1857, 0.0
        %v1890 = vmax.f32 %v1858, 0.0
        %v1891 = vmax.f32 %v1859, 0.0
        %v1892 = vmax.f32 %v1860, 0.0
        %v1893 = vmax.f32 %v1861, 0.0
        %v1894 = vmax.f32 %v1862, 0.0
        %v1895 = vmax.f32 %v1863, 0.0
        %v1896 = vmax.f32 %v1864, 0.0
        %v1897 = vmax.f32 %v1865, 0.0
        %v1898 = vmax.f32 %v1866, 0.0
        %v1899 = vmax.f32 %v1867, 0.0
        %v1900 = vmax.f32 %v1868, 0.0
        %v1901 = vpack.c.bf16 %v1870, %v1869
        %v1902 = vpack.c.bf16 %v1872, %v1871
        %v1903 = vpack.c.bf16 %v1874, %v1873
        %v1904 = vpack.c.bf16 %v1876, %v1875
        %v1905 = vpack.c.bf16 %v1878, %v1877
        %v1906 = vpack.c.bf16 %v1880, %v1879
        %v1907 = vpack.c.bf16 %v1882, %v1881
        %v1908 = vpack.c.bf16 %v1884, %v1883
        %v1909 = vpack.c.bf16 %v1886, %v1885
        %v1910 = vpack.c.bf16 %v1888, %v1887
        %v1911 = vpack.c.bf16 %v1890, %v1889
        %v1912 = vpack.c.bf16 %v1892, %v1891
        %v1913 = vpack.c.bf16 %v1894, %v1893
        %v1914 = vpack.c.bf16 %v1896, %v1895
        %v1915 = vpack.c.bf16 %v1898, %v1897
        %v1916 = vpack.c.bf16 %v1900, %v1899
        %v1917 = vld [vmem:[%s2] sm:$0xf]
        %v1918 = vld [vmem:[%s2 + $0x4] sm:$0xf]
        %v1919 = vld [vmem:[%s2 + $0x8] sm:$0xf]
        %v1920 = vld [vmem:[%s2 + $0xc] sm:$0xf]
        %v1921 = vld [vmem:[%s2 + $0x10] sm:$0xf]
        %v1922 = vld [vmem:[%s2 + $0x14] sm:$0xf]
        %v1923 = vld [vmem:[%s2 + $0x18] sm:$0xf]
        %v1924 = vld [vmem:[%s2 + $0x1c] sm:$0xf]
        %v1933 = vunpack.c.l.b16 %v1917
        %v1934 = vunpack.c.l.b16 %v1918
        %v1935 = vunpack.c.l.b16 %v1919
        %v1936 = vunpack.c.l.b16 %v1920
        %v1937 = vunpack.c.l.b16 %v1921
        %v1938 = vunpack.c.l.b16 %v1922
        %v1939 = vunpack.c.l.b16 %v1923
        %v1940 = vunpack.c.l.b16 %v1924
        %v1941 = vpack.c.b16 %v1934, %v1933
        %v1942 = vpack.c.b16 %v1936, %v1935
        %v1943 = vpack.c.b16 %v1938, %v1937
        %v1944 = vpack.c.b16 %v1940, %v1939
        %vm1949 = vcmask 523264
        %v1951 = vsel %vm1949, %v1901, 0
        %v1954 = vsel %vm1949, %v1902, 0
        %v1957 = vsel %vm1949, %v1903, 0
        %v1960 = vsel %vm1949, %v1904, 0
        %v1963 = vsel %vm1949, %v1905, 0
        %v1966 = vsel %vm1949, %v1906, 0
        %v1969 = vsel %vm1949, %v1907, 0
        %v1972 = vsel %vm1949, %v1908, 0
        %v1975 = vsel %vm1949, %v1909, 0
        %v1978 = vsel %vm1949, %v1910, 0
        %v1981 = vsel %vm1949, %v1911, 0
        %v1984 = vsel %vm1949, %v1912, 0
        %v1987 = vsel %vm1949, %v1913, 0
        %v1990 = vsel %vm1949, %v1914, 0
        %v1993 = vsel %vm1949, %v1915, 0
        %v1996 = vsel %vm1949, %v1916, 0
        %1998 = vmatpush.bf16.msra.mxu0 0
        %1999 = vmatpush.bf16.msra.mxu0 0
        %2000 = vmatpush.bf16.msra.mxu0 0
        %2001 = vmatpush.bf16.msra.mxu0 0
        %2002 = vmatpush.bf16.msra.mxu0 %v1944
        %2003 = vmatpush.bf16.msra.mxu0 %v1943
        %2004 = vmatpush.bf16.msra.mxu0 %v1942
        %2005 = vmatpush.bf16.msra.mxu0 %v1941
        %2006 = vmatmul.bf16.gmra.mxu0 %v1951
        %v2007 = vpop.f32.mrf.mxu0
        %v2008 = vadd.f32 0.0, %v2007
        %v2009 = vpop.f32.mrf.mxu0
        %v2010 = vadd.f32 0.0, %v2009
        %2011 = vmatmul.bf16.gmra.mxu0 %v1954
        %v2012 = vpop.f32.mrf.mxu0
        %v2013 = vadd.f32 0.0, %v2012
        %v2014 = vpop.f32.mrf.mxu0
        %v2015 = vadd.f32 0.0, %v2014
        %2016 = vmatmul.bf16.gmra.mxu0 %v1957
        %v2017 = vpop.f32.mrf.mxu0
        %v2018 = vadd.f32 0.0, %v2017
        %v2019 = vpop.f32.mrf.mxu0
        %v2020 = vadd.f32 0.0, %v2019
        %2021 = vmatmul.bf16.gmra.mxu0 %v1960
        %v2022 = vpop.f32.mrf.mxu0
        %v2023 = vadd.f32 0.0, %v2022
        %v2024 = vpop.f32.mrf.mxu0
        %v2025 = vadd.f32 0.0, %v2024
        %2026 = vmatmul.bf16.gmra.mxu0 %v1963
        %v2027 = vpop.f32.mrf.mxu0
        %v2028 = vadd.f32 0.0, %v2027
        %v2029 = vpop.f32.mrf.mxu0
        %v2030 = vadd.f32 0.0, %v2029
        %2031 = vmatmul.bf16.gmra.mxu0 %v1966
        %v2032 = vpop.f32.mrf.mxu0
        %v2033 = vadd.f32 0.0, %v2032
        %v2034 = vpop.f32.mrf.mxu0
        %v2035 = vadd.f32 0.0, %v2034
        %2036 = vmatmul.bf16.gmra.mxu0 %v1969
        %v2037 = vpop.f32.mrf.mxu0
        %v2038 = vadd.f32 0.0, %v2037
        %v2039 = vpop.f32.mrf.mxu0
        %v2040 = vadd.f32 0.0, %v2039
        %2041 = vmatmul.bf16.gmra.mxu0 %v1972
        %v2042 = vpop.f32.mrf.mxu0
        %v2043 = vadd.f32 0.0, %v2042
        %v2044 = vpop.f32.mrf.mxu0
        %v2045 = vadd.f32 0.0, %v2044
        %2046 = vmatmul.bf16.gmra.mxu0 %v1975
        %v2047 = vpop.f32.mrf.mxu0
        %v2048 = vadd.f32 0.0, %v2047
        %v2049 = vpop.f32.mrf.mxu0
        %v2050 = vadd.f32 0.0, %v2049
        %2051 = vmatmul.bf16.gmra.mxu0 %v1978
        %v2052 = vpop.f32.mrf.mxu0
        %v2053 = vadd.f32 0.0, %v2052
        %v2054 = vpop.f32.mrf.mxu0
        %v2055 = vadd.f32 0.0, %v2054
        %2056 = vmatmul.bf16.gmra.mxu0 %v1981
        %v2057 = vpop.f32.mrf.mxu0
        %v2058 = vadd.f32 0.0, %v2057
        %v2059 = vpop.f32.mrf.mxu0
        %v2060 = vadd.f32 0.0, %v2059
        %2061 = vmatmul.bf16.gmra.mxu0 %v1984
        %v2062 = vpop.f32.mrf.mxu0
        %v2063 = vadd.f32 0.0, %v2062
        %v2064 = vpop.f32.mrf.mxu0
        %v2065 = vadd.f32 0.0, %v2064
        %2066 = vmatmul.bf16.gmra.mxu0 %v1987
        %v2067 = vpop.f32.mrf.mxu0
        %v2068 = vadd.f32 0.0, %v2067
        %v2069 = vpop.f32.mrf.mxu0
        %v2070 = vadd.f32 0.0, %v2069
        %2071 = vmatmul.bf16.gmra.mxu0 %v1990
        %v2072 = vpop.f32.mrf.mxu0
        %v2073 = vadd.f32 0.0, %v2072
        %v2074 = vpop.f32.mrf.mxu0
        %v2075 = vadd.f32 0.0, %v2074
        %2076 = vmatmul.bf16.gmra.mxu0 %v1993
        %v2077 = vpop.f32.mrf.mxu0
        %v2078 = vadd.f32 0.0, %v2077
        %v2079 = vpop.f32.mrf.mxu0
        %v2080 = vadd.f32 0.0, %v2079
        %2081 = vmatmul.bf16.gmra.mxu0 %v1996
        %v2082 = vpop.f32.mrf.mxu0
        %v2083 = vadd.f32 0.0, %v2082
        %v2084 = vpop.f32.mrf.mxu0
        %v2085 = vadd.f32 0.0, %v2084
        %2086 = vdwg.mxu0
        %2087 = vst [vmem:[%s163] sm:$0xff] %v2008
        %2088 = vst [vmem:[%s163 + $0x8] sm:$0xff] %v2010
        %2089 = vst [vmem:[%s163 + $0x10] sm:$0xff] %v2013
        %2090 = vst [vmem:[%s163 + $0x18] sm:$0xff] %v2015
        %2091 = vst [vmem:[%s163 + $0x20] sm:$0xff] %v2018
        %2092 = vst [vmem:[%s163 + $0x28] sm:$0xff] %v2020
        %2093 = vst [vmem:[%s163 + $0x30] sm:$0xff] %v2023
        %2094 = vst [vmem:[%s163 + $0x38] sm:$0xff] %v2025
        %2095 = vst [vmem:[%s163 + $0x40] sm:$0xff] %v2028
        %2096 = vst [vmem:[%s163 + $0x48] sm:$0xff] %v2030
        %2097 = vst [vmem:[%s163 + $0x50] sm:$0xff] %v2033
        %2098 = vst [vmem:[%s163 + $0x58] sm:$0xff] %v2035
        %2099 = vst [vmem:[%s163 + $0x60] sm:$0xff] %v2038
        %2100 = vst [vmem:[%s163 + $0x68] sm:$0xff] %v2040
        %2101 = vst [vmem:[%s163 + $0x70] sm:$0xff] %v2043
        %2102 = vst [vmem:[%s163 + $0x78] sm:$0xff] %v2045
        %2103 = vst [vmem:[%s163 + $0x80] sm:$0xff] %v2048
        %2104 = vst [vmem:[%s163 + $0x88] sm:$0xff] %v2050
        %2105 = vst [vmem:[%s163 + $0x90] sm:$0xff] %v2053
        %2106 = vst [vmem:[%s163 + $0x98] sm:$0xff] %v2055
        %2107 = vst [vmem:[%s163 + $0xa0] sm:$0xff] %v2058
        %2108 = vst [vmem:[%s163 + $0xa8] sm:$0xff] %v2060
        %2109 = vst [vmem:[%s163 + $0xb0] sm:$0xff] %v2063
        %2110 = vst [vmem:[%s163 + $0xb8] sm:$0xff] %v2065
        %2111 = vst [vmem:[%s163 + $0xc0] sm:$0xff] %v2068
        %2112 = vst [vmem:[%s163 + $0xc8] sm:$0xff] %v2070
        %2113 = vst [vmem:[%s163 + $0xd0] sm:$0xff] %v2073
        %2114 = vst [vmem:[%s163 + $0xd8] sm:$0xff] %v2075
        %2115 = vst [vmem:[%s163 + $0xe0] sm:$0xff] %v2078
        %2116 = vst [vmem:[%s163 + $0xe8] sm:$0xff] %v2080
        %2117 = vst [vmem:[%s163 + $0xf0] sm:$0xff] %v2083
        %2118 = vst [vmem:[%s163 + $0xf8] sm:$0xff] %v2085
        %s2119 = sand.u32 %s93, 1
        %s2120 = scalar_lea.sflag [#allocation3], %s2119
        %s2121 = sand.u32 %s93, 1
        %s2122 = smul.addr %s2121, 256
        %s2123 = scalar_lea.vmem [#allocation2], %s2122
        // Predicated region
        $region33: #{block_forward.1} parent=31 // pred_check
          %p2124 = pneg %p103
        $region34: #{block_forward.1} parent=31 // pred_check_branch
          %2126 = sbr.rel (%p2124) target = $region36
        $region35: #{block_forward.1} parent=31 // pred_region
          %2128 = vsyncadd %s2120, 0
          %s2129 = smul.addr %s17, 32
          %s2130 = smul.addr %s2129, 8
          %s2131 = scalar_lea.hbm %s3, %s2130
          %s2132 = sshll.u32 %s2123, 4
          %s2133 = int_to_ptr.vmem [resolvable:$true] %s2132
          %s2134 = sshll.u32 %s2131, 4
          %s2135 = int_to_ptr.hbm [resolvable:$true] %s2134
          %2140 = dma.vmem_to_hbm [thread:$0]  %s2133, 4096, %s2135, %s2120, 128, 128, 8
        $region36: #{block_forward.1} parent=31 // pred_fallthru
          _
      $region32: #{block_forward.1} parent=5 // pred_fallthru
        _
      %p2141 = scmp.le.s32.totalorder 2, %s12
      // Predicated region
      $region37: #{block_forward.1} parent=5 // pred_check
        %p2142 = pneg %p2141
      $region38: #{block_forward.1} parent=5 // pred_check_branch
        %2144 = sbr.rel (%p2142) target = $region40
      $region39: #{block_forward.1} parent=5 // pred_region
        %s2145 = ssub.s32 %s12, 2
        // Predicated region
        $region41: #{block_forward.1} parent=39 // pred_check
          %p2146 = pneg %p109
        $region42: #{block_forward.1} parent=39 // pred_check_branch
          %2148 = sbr.rel (%p2146) target = $region44
        $region43: #{block_forward.1} parent=39 // pred_region
          %s2149 = sand.u32 %s94, 1
          %s2150 = scalar_lea.sflag [#allocation3], %s2149
          %s2151 = sand.u32 %s94, 1
          %s2152 = smul.addr %s2151, 256
          %s2153 = scalar_lea.vmem [#allocation2], %s2152
          %2155 = dma.done %s2150, 4096
        $region44: #{block_forward.1} parent=39 // pred_fallthru
          _
      $region40: #{block_forward.1} parent=5 // pred_fallthru
        _
    $region6: #{block_forward.1} parent=1 // loop_footer
      %s16 = sadd.s32 1, %s12
    $region7: #{block_forward.1} parent=1 // loop_footer_branch
      %11 = sbr.rel target = $region3
    $region8: #{block_forward.1} parent=1 // loop_exit
      _
    %2156 = vsyncpa [#allocation3], 1
    %s2157 = scalar_lea.sflag [#allocation3], 1
    %2158 = vsyncpa %s2157, 1

</llo_original>
